<compile_context>
chip_gen: v7x
topology: tpu7x:2x2x1
jax: 0.10.0
libtpu: 0.0.40
codegen_flags: <defaults>
</compile_context>

<pallas_src>
import functools

import numpy as np

import jax
import jax.numpy as jnp
from jax import lax
from jax.experimental import pallas as pl
from jax.experimental.pallas import tpu as pltpu

OP = 128  # lane-dense (zero-padded) logit width


def _fused_forward_kernel(x_ref, t_ref, cb_ref, wc_ref, fb_ref, out_ref,
                          *, B, H, W, Cin, Cout):
    """One grid step == B images; all intermediates stay in VMEM/vregs.

    x_ref  : (1, B, H, W*Cin)    channels-minor input rows (lane = w*Cin + ci)
    t_ref  : (3, W*Cin, W*Cout)  Toeplitz conv weights (W halo folded in as zeros)
    cb_ref : (1, W*Cout)         conv bias tiled over w
    wc_ref : (H*W*Cout, OP)      classifier weight on the *uncompacted* pooled map
                                 (zero rows at odd h / odd w, O zero-padded to OP)
    fb_ref : (1, OP)             classifier bias (padded)
    out_ref: (1, B, OP)          padded logits
    """
    WC = W * Cout
    x = x_ref[0]                                              # (B, H, W*Cin)

    # H halo (padding=1) built in VMEM; the W halo lives in t_ref's zero rows.
    zrow = jnp.zeros((B, 1, W * Cin), jnp.float32)
    xp = jnp.concatenate([zrow, x, zrow], axis=1)             # (B, H+2, W*Cin)

    # Conv 3x3 + bias + ReLU: 3 accumulated matmuls, K = W*Cin, N = W*Cout.
    acc = jnp.zeros((B * H, WC), jnp.float32)
    for kh in range(3):
        xs = xp[:, kh:kh + H, :].reshape(B * H, W * Cin)
        acc = acc + jnp.dot(xs, t_ref[kh], preferred_element_type=jnp.float32)
    y = jnp.maximum(acc + cb_ref[...], 0.0)                   # (B*H, W*Cout)

    # 2x2 / stride-2 max pool, no compaction:
    #   w-pairs: lane roll by Cout; h-pairs: sublane roll by 1.
    # Valid pooled values sit at even (h, w); odd positions are finite garbage
    # that is multiplied by zero rows of wc_ref below.
    m = jnp.maximum(y, pltpu.roll(y, WC - Cout, axis=1))      # max over (w, w+1)
    p = jnp.maximum(m, pltpu.roll(m, B * H - 1, axis=0))      # max over (h, h+1)

    # Classifier: one MXU matmul on the lane-dense pooled slab.
    logits = jnp.dot(p.reshape(B, H * WC), wc_ref[...],
                     preferred_element_type=jnp.float32) + fb_ref[...]
    out_ref[...] = logits.reshape(1, B, OP)


def prepare_params(conv_w, conv_b, fc_w, fc_b, H, W):
    """One-time weight re-layout (outside the hot path; plain numpy)."""
    cw = np.asarray(conv_w, np.float32)          # (Cout, Cin, 3, 3)
    cb = np.asarray(conv_b, np.float32)          # (Cout,)
    fw = np.asarray(fc_w, np.float32)            # (O, Cout*Ho*Wo)
    fb = np.asarray(fc_b, np.float32)            # (O,)
    Cout, Cin, KH, KW = cw.shape
    O = fw.shape[0]
    Ho, Wo = H // 2, W // 2
    S = Ho * Wo
    assert fw.shape[1] == Cout * S and O <= OP

    # Toeplitz conv weights: t[kh, w_in*Cin + ci, w*Cout + co] = cw[co, ci, kh, w_in - w + 1]
    # (zero where w_in - w + 1 is outside {0,1,2} or w_in outside [0, W) -> W padding).
    tz = np.zeros((KH, W * Cin, W * Cout), np.float32)
    for kh in range(KH):
        for w in range(W):
            for kw in range(KW):
                w_in = w + kw - 1
                if 0 <= w_in < W:
                    tz[kh, w_in * Cin:(w_in + 1) * Cin,
                       w * Cout:(w + 1) * Cout] = cw[:, :, kh, kw].T

    cbt = np.tile(cb, W).reshape(1, W * Cout)    # cbt[0, w*Cout + co] = conv_b[co]

    # Classifier weight on the uncompacted pooled map:
    #   wc[(2*h2)*W*Cout + (2*w2)*Cout + c, o] = fc_w[o, c*S + h2*Wo + w2]
    # zero rows elsewhere (odd h / odd w), O zero-padded to OP lanes.
    wc = np.zeros((H * W * Cout, OP), np.float32)
    for h2 in range(Ho):
        for w2 in range(Wo):
            r0 = (2 * h2) * (W * Cout) + (2 * w2) * Cout
            cols = np.arange(Cout) * S + h2 * Wo + w2
            wc[r0:r0 + Cout, :O] = fw[:, cols].T
    fbt = np.zeros((1, OP), np.float32)
    fbt[0, :O] = fb

    return (jnp.asarray(tz), jnp.asarray(cbt), jnp.asarray(wc), jnp.asarray(fbt))


def _pick_block_batch(n, cap=16):
    """Largest divisor of n that is <= cap while keeping >= 2 grid steps when
    possible (so both v7x TensorCores get work) and bounding per-step VMEM."""
    divisors = [d for d in range(1, min(n, cap) + 1) if n % d == 0]
    two_step = [d for d in divisors if n // d >= 2]
    return max(two_step) if two_step else max(divisors)


@functools.partial(jax.jit, static_argnames=("num_classes",))
def model_forward(x_nchw, prepped, *, num_classes):
    tz, cbt, wc, fbt = prepped
    N, Cin, H, W = x_nchw.shape
    Cout = tz.shape[-1] // W
    assert H % 2 == 0 and W % 2 == 0

    B = _pick_block_batch(N)
    G = N // B

    # Only remaining wrapper-side relayout: one fused NCHW -> channels-minor copy.
    # (Padding, im2col, flatten and output compaction are folded into the kernel
    #  and the pre-permuted weights.)
    xh = jnp.transpose(x_nchw, (0, 2, 3, 1)).reshape(G, B, H, W * Cin)

    kernel = functools.partial(_fused_forward_kernel,
                               B=B, H=H, W=W, Cin=Cin, Cout=Cout)
    out = pl.pallas_call(
        kernel,
        out_shape=jax.ShapeDtypeStruct((G, B, OP), jnp.float32),
        grid_spec=pltpu.PrefetchScalarGridSpec(
            num_scalar_prefetch=0,
            grid=(G,),
            in_specs=[
                pl.BlockSpec((1, B, H, W * Cin), lambda g: (g, 0, 0, 0)),
                pl.BlockSpec((3, W * Cin, W * Cout), lambda g: (0, 0, 0)),
                pl.BlockSpec((1, W * Cout), lambda g: (0, 0)),
                pl.BlockSpec((H * W * Cout, OP), lambda g: (0, 0)),
                pl.BlockSpec((1, OP), lambda g: (0, 0)),
            ],
            out_specs=pl.BlockSpec((1, B, OP), lambda g: (g, 0, 0))),
        compiler_params=pltpu.CompilerParams(
            dimension_semantics=("parallel",)),
    )(xh, tz, cbt, wc, fbt)

    # Lane-dense padded logits -> slice the real classes (before any argmax/softmax).
    return out.reshape(N, OP)[:, :num_classes]


# Pure-JAX reference (for self-validation only; no Pallas).
def reference_forward(x_nchw, params):
    conv_w, conv_b, fc_w, fc_b = params
    y = lax.conv_general_dilated(
        x_nchw, conv_w, (1, 1), 'SAME',
        dimension_numbers=('NCHW', 'OIHW', 'NCHW'))
    y = jnp.maximum(y + conv_b[None, :, None, None], 0.0)
    y = lax.reduce_window(y, -jnp.inf, lax.max,
                          (1, 1, 2, 2), (1, 1, 2, 2), 'VALID')
    flat = y.reshape(y.shape[0], -1)
    return flat @ fc_w.T + fc_b


if __name__ == "__main__":
    key = jax.random.PRNGKey(0)
    k1, k2, k3, k4, k5 = jax.random.split(key, 5)

    N, Cin, H, W = 2, 4, 16, 16
    Cout, num_classes = 8, 10
    fc_in = Cout * (H // 2) * (W // 2)                 # 8 * 8 * 8 = 512

    x = jax.random.normal(k1, (N, Cin, H, W), jnp.float32)
    conv_w = jax.random.normal(k2, (Cout, Cin, 3, 3), jnp.float32) * 0.1
    conv_b = jax.random.normal(k3, (Cout,), jnp.float32) * 0.1
    fc_w = jax.random.normal(k4, (num_classes, fc_in), jnp.float32) * 0.05
    fc_b = jax.random.normal(k5, (num_classes,), jnp.float32) * 0.05
    params = (conv_w, conv_b, fc_w, fc_b)

    prepped = prepare_params(conv_w, conv_b, fc_w, fc_b, H, W)  # one-time re-layout
    out = model_forward(x, prepped, num_classes=num_classes)
    jax.block_until_ready(out)

    ref = reference_forward(x, params)
    assert out.shape == (N, num_classes)
    assert jnp.allclose(out, ref, atol=2e-3, rtol=2e-3), "mismatch vs reference"
    print("KERNEL_OK")
</pallas_src>

<mosaic_0001>
module attributes {stable_mosaic.version = 11 : i64} {
  func.func @_fused_forward_kernel(%arg0: i32, %arg1: memref<1x1x16x64xf32, #tpu.memory_space<vmem>>, %arg2: memref<3x64x128xf32, #tpu.memory_space<vmem>>, %arg3: memref<1x128xf32, #tpu.memory_space<vmem>>, %arg4: memref<2048x128xf32, #tpu.memory_space<vmem>>, %arg5: memref<1x128xf32, #tpu.memory_space<vmem>>, %arg6: memref<1x1x128xf32, #tpu.memory_space<vmem>>) attributes {dimension_semantics = [#tpu.dimension_semantics<parallel>], iteration_bounds = array<i64: 2>, scalar_prefetch = 0 : i64, scratch_operands = 0 : i64, tpu.core_type = #tpu.core_type<tc>, window_params = [{transform_indices = @transform_0, window_bounds = array<i64: 1, 1, 16, 64>}, {pipeline_mode = #tpu.pipeline_mode<synchronous>, transform_indices = @transform_1, window_bounds = array<i64: 3, 64, 128>}, {pipeline_mode = #tpu.pipeline_mode<synchronous>, transform_indices = @transform_2, window_bounds = array<i64: 1, 128>}, {pipeline_mode = #tpu.pipeline_mode<synchronous>, transform_indices = @transform_3, window_bounds = array<i64: 2048, 128>}, {pipeline_mode = #tpu.pipeline_mode<synchronous>, transform_indices = @transform_4, window_bounds = array<i64: 1, 128>}, {transform_indices = @transform_5, window_bounds = array<i64: 1, 1, 128>}]} {
    %c0 = arith.constant 0 : index
    %c0_0 = arith.constant 0 : index
    %c0_1 = arith.constant 0 : index
    %c0_2 = arith.constant 0 : index
    %0 = vector.load %arg1[%c0, %c0_0, %c0_1, %c0_2] : memref<1x1x16x64xf32, #tpu.memory_space<vmem>>, vector<1x1x16x64xf32>
    %1 = vector.shape_cast %0 : vector<1x1x16x64xf32> to vector<1x16x64xf32>
    %cst = arith.constant 0.000000e+00 : f32
    %2 = vector.broadcast %cst : f32 to vector<1x1x64xf32>
    %3 = tpu.concatenate %2, %1, %2 in 1 : vector<1x1x64xf32>, vector<1x16x64xf32>, vector<1x1x64xf32> -> vector<1x18x64xf32>
    %cst_3 = arith.constant 0.000000e+00 : f32
    %4 = vector.broadcast %cst_3 : f32 to vector<16x128xf32>
    %5 = vector.extract_strided_slice %3 {offsets = [0, 0, 0], sizes = [1, 16, 64], strides = [1, 1, 1]} : vector<1x18x64xf32> to vector<1x16x64xf32>
    %6 = vector.shape_cast %5 : vector<1x16x64xf32> to vector<16x64xf32>
    %c0_4 = arith.constant 0 : index
    %c0_5 = arith.constant 0 : index
    %c0_6 = arith.constant 0 : index
    %7 = vector.load %arg2[%c0_4, %c0_5, %c0_6] : memref<3x64x128xf32, #tpu.memory_space<vmem>>, vector<1x64x128xf32>
    %8 = vector.shape_cast %7 : vector<1x64x128xf32> to vector<64x128xf32>
    %cst_7 = arith.constant dense<0.000000e+00> : vector<16x128xf32>
    %9 = tpu.matmul %6, %8, %cst_7 {dimension_numbers = #tpu.dot_dimension_numbers<[1], [0], [0], [1], [0, 0, 1, 1], [], []>} : vector<16x64xf32>, vector<64x128xf32>, vector<16x128xf32> -> vector<16x128xf32>
    %10 = arith.addf %4, %9 : vector<16x128xf32>
    %11 = vector.extract_strided_slice %3 {offsets = [0, 1, 0], sizes = [1, 16, 64], strides = [1, 1, 1]} : vector<1x18x64xf32> to vector<1x16x64xf32>
    %12 = vector.shape_cast %11 : vector<1x16x64xf32> to vector<16x64xf32>
    %c1 = arith.constant 1 : index
    %c0_8 = arith.constant 0 : index
    %c0_9 = arith.constant 0 : index
    %13 = vector.load %arg2[%c1, %c0_8, %c0_9] : memref<3x64x128xf32, #tpu.memory_space<vmem>>, vector<1x64x128xf32>
    %14 = vector.shape_cast %13 : vector<1x64x128xf32> to vector<64x128xf32>
    %cst_10 = arith.constant dense<0.000000e+00> : vector<16x128xf32>
    %15 = tpu.matmul %12, %14, %cst_10 {dimension_numbers = #tpu.dot_dimension_numbers<[1], [0], [0], [1], [0, 0, 1, 1], [], []>} : vector<16x64xf32>, vector<64x128xf32>, vector<16x128xf32> -> vector<16x128xf32>
    %16 = arith.addf %10, %15 : vector<16x128xf32>
    %17 = vector.extract_strided_slice %3 {offsets = [0, 2, 0], sizes = [1, 16, 64], strides = [1, 1, 1]} : vector<1x18x64xf32> to vector<1x16x64xf32>
    %18 = vector.shape_cast %17 : vector<1x16x64xf32> to vector<16x64xf32>
    %c2 = arith.constant 2 : index
    %c0_11 = arith.constant 0 : index
    %c0_12 = arith.constant 0 : index
    %19 = vector.load %arg2[%c2, %c0_11, %c0_12] : memref<3x64x128xf32, #tpu.memory_space<vmem>>, vector<1x64x128xf32>
    %20 = vector.shape_cast %19 : vector<1x64x128xf32> to vector<64x128xf32>
    %cst_13 = arith.constant dense<0.000000e+00> : vector<16x128xf32>
    %21 = tpu.matmul %18, %20, %cst_13 {dimension_numbers = #tpu.dot_dimension_numbers<[1], [0], [0], [1], [0, 0, 1, 1], [], []>} : vector<16x64xf32>, vector<64x128xf32>, vector<16x128xf32> -> vector<16x128xf32>
    %22 = arith.addf %16, %21 : vector<16x128xf32>
    %c0_14 = arith.constant 0 : index
    %c0_15 = arith.constant 0 : index
    %23 = vector.load %arg3[%c0_14, %c0_15] : memref<1x128xf32, #tpu.memory_space<vmem>>, vector<1x128xf32>
    %24 = vector.broadcast %23 : vector<1x128xf32> to vector<16x128xf32>
    %25 = arith.addf %22, %24 : vector<16x128xf32>
    %cst_16 = arith.constant 0.000000e+00 : f32
    %26 = vector.broadcast %cst_16 : f32 to vector<16x128xf32>
    %27 = arith.maximumf %25, %26 : vector<16x128xf32>
    %c120_i32 = arith.constant 120 : i32
    %28 = tpu.dynamic_rotate %27 by %c120_i32 dim 1 : vector<16x128xf32>, i32 -> vector<16x128xf32>
    %29 = arith.maximumf %27, %28 : vector<16x128xf32>
    %c15_i32 = arith.constant 15 : i32
    %30 = tpu.dynamic_rotate %29 by %c15_i32 dim 0 : vector<16x128xf32>, i32 -> vector<16x128xf32>
    %31 = arith.maximumf %29, %30 : vector<16x128xf32>
    %32 = vector.shape_cast %31 : vector<16x128xf32> to vector<1x2048xf32>
    %c0_17 = arith.constant 0 : index
    %c0_18 = arith.constant 0 : index
    %33 = vector.load %arg4[%c0_17, %c0_18] : memref<2048x128xf32, #tpu.memory_space<vmem>>, vector<2048x128xf32>
    %cst_19 = arith.constant dense<0.000000e+00> : vector<1x128xf32>
    %34 = tpu.matmul %32, %33, %cst_19 {dimension_numbers = #tpu.dot_dimension_numbers<[1], [0], [0], [1], [0, 0, 1, 1], [], []>} : vector<1x2048xf32>, vector<2048x128xf32>, vector<1x128xf32> -> vector<1x128xf32>
    %c0_20 = arith.constant 0 : index
    %c0_21 = arith.constant 0 : index
    %35 = vector.load %arg5[%c0_20, %c0_21] : memref<1x128xf32, #tpu.memory_space<vmem>>, vector<1x128xf32>
    %36 = arith.addf %34, %35 : vector<1x128xf32>
    %37 = vector.shape_cast %36 : vector<1x128xf32> to vector<1x1x128xf32>
    %c0_22 = arith.constant 0 : index
    %c0_23 = arith.constant 0 : index
    %c0_24 = arith.constant 0 : index
    %38 = vector.load %arg6[%c0_22, %c0_23, %c0_24] : memref<1x1x128xf32, #tpu.memory_space<vmem>>, vector<1x1x128xf32>
    tpu.vector_store %arg6[%c0_22, %c0_23, %c0_24], %37 {strides = array<i32>} : memref<1x1x128xf32, #tpu.memory_space<vmem>>, vector<1x1x128xf32>,
    return
  }
  func.func @transform_0(%arg0: i32) -> (i32, i32, i32, i32) {
    %c0_i32 = arith.constant 0 : i32
    %c0_i32_0 = arith.constant 0 : i32
    %c0_i32_1 = arith.constant 0 : i32
    %c0_i32_2 = arith.constant 0 : i32
    return %arg0, %c0_i32, %c0_i32_0, %c0_i32_1 : i32, i32, i32, i32
  }
  func.func @transform_1(%arg0: i32) -> (i32, i32, i32) {
    %c0_i32 = arith.constant 0 : i32
    %c0_i32_0 = arith.constant 0 : i32
    %c0_i32_1 = arith.constant 0 : i32
    %c0_i32_2 = arith.constant 0 : i32
    return %c0_i32, %c0_i32_0, %c0_i32_1 : i32, i32, i32
  }
  func.func @transform_2(%arg0: i32) -> (i32, i32) {
    %c0_i32 = arith.constant 0 : i32
    %c0_i32_0 = arith.constant 0 : i32
    %c0_i32_1 = arith.constant 0 : i32
    return %c0_i32, %c0_i32_0 : i32, i32
  }
  func.func @transform_3(%arg0: i32) -> (i32, i32) {
    %c0_i32 = arith.constant 0 : i32
    %c0_i32_0 = arith.constant 0 : i32
    %c0_i32_1 = arith.constant 0 : i32
    return %c0_i32, %c0_i32_0 : i32, i32
  }
  func.func @transform_4(%arg0: i32) -> (i32, i32) {
    %c0_i32 = arith.constant 0 : i32
    %c0_i32_0 = arith.constant 0 : i32
    %c0_i32_1 = arith.constant 0 : i32
    return %c0_i32, %c0_i32_0 : i32, i32
  }
  func.func @transform_5(%arg0: i32) -> (i32, i32, i32) {
    %c0_i32 = arith.constant 0 : i32
    %c0_i32_0 = arith.constant 0 : i32
    %c0_i32_1 = arith.constant 0 : i32
    return %arg0, %c0_i32, %c0_i32_0 : i32, i32, i32
  }
}

</mosaic_0001>

<llo_original>
// kernel: model_forward.1
$region0: #{model_forward.1}
  #allocation0 [shape = 'u32[]', space=smem, size = 0x4, offset = 0x4, fixed_abs, tag = 'smem constant byte address 0x4 - core index']
  #allocation1 [shape = 'u32[144,128]{1,0:T(1,128)}', space=vmem, size = 0x12000, scoped, tag = 'internal scratch']
  %s0 = inlined_call_operand.vmem [shape: f32[2,1,16,64], index: 0, kind: input, shape index: {}]
  %s1 = inlined_call_operand.vmem [shape: f32[3,64,128], index: 1, kind: input, shape index: {}]
  %s2 = inlined_call_operand.vmem [shape: f32[1,128], index: 2, kind: input, shape index: {}]
  %s3 = inlined_call_operand.hbm [shape: f32[2048,128], index: 3, kind: input, shape index: {}]
  %s4 = inlined_call_operand.vmem [shape: f32[1,128], index: 4, kind: input, shape index: {}]
  %s5 = inlined_call_operand.hbm [shape: f32[2,1,128], index: 5, kind: output, shape index: {}]
  %s6 = sld [smem:[#allocation0]]
  $region57: #{model_forward.1} parent=0
    _
  %s8 = ssub.s32 1, %s6
  %s9 = scalar_select 0, %s8, %s6
  $region1: #{model_forward.1} parent=0
    #allocation2 [shape = 'u8[1048576]{0}', space=vmem, size = 0x100000, scoped, tag = 'input window, operand 3, single buffered']
    #allocation3 [shape = 's32[2]{0}', space=sflag, size = 0x8, scoped, tag = 'scoped memory for model_forward.1']
    #allocation4 [shape = 's32[2]{0}', space=sflag, size = 0x8, scoped, tag = 'scoped memory for model_forward.1']
    #allocation5 [shape = 'u8[1024]{0}', space=vmem, size = 0x400, scoped, tag = 'output window, operand 0']
    %10 = vsyncpa [#allocation3], 0
    %11 = vsyncpa [#allocation4], 0
    %s12 = scalar_lea.sflag [#allocation4], 1
    %13 = vsyncpa %s12, 0
    loop: start=0, step=1, limit=4
    $region2: #{model_forward.1} parent=1 // loop_pre_header
      _
    $region3: #{model_forward.1} parent=1 // loop_header
      %s15 = sphi 0, %s19
      %p16 = scmp.ge.s32.totalorder %s15, 4
      %s25 = sphi 0, %s27
      %s28 = sphi 0, %s25
      %s29 = sphi 0, %s28
      %s45 = sphi 0, %s29
      %s49 = sphi 0, %s49
      %s51 = sphi 0, %s49
      %s52 = sphi 0, %s51
      %s66 = sphi 0, %s52
      %s70 = sphi 0, %s70
      %s72 = sphi 0, %s70
      %s73 = sphi 0, %s72
      %s87 = sphi 0, %s73
      %s91 = sphi 0, %s91
      %s93 = sphi 0, %s91
      %s94 = sphi 0, %s93
      %s108 = sphi 0, %s94
      %s112 = sphi 0, %s112
      %s114 = sphi 0, %s112
      %s115 = sphi 0, %s114
      %s129 = sphi 0, %s115
      %s135 = sphi 0, %s137
      %s138 = sphi 0, %s135
      %s139 = sphi 0, %s138
      %s155 = sphi 0, %s139
    $region4: #{model_forward.1} parent=1 // loop_header_branch
      %18 = sbr.rel (%p16) target = $region8
    $region5: #{model_forward.1} parent=1 // loop_body
      %s20 = ssub.s32 %s15, 1
      %s21 = ssub.s32 %s15, 2
      %s22 = sadd.s32 %s15, 1
      %s23 = ssub.s32 %s15, %s22
      %p24 = scmp.eq.s32.totalorder %s23, 0
      %s26 = sadd.s32 %s25, 1
      %s27 = scalar_select %p24, %s25, %s26
      %p30 = pneg %p24
      %p31 = scmp.eq.s32.totalorder %s15, 1
      %p32 = por %p30, %p31
      %p33 = scmp.ne.s32.totalorder %s25, %s28
      %p34 = scmp.eq.s32.totalorder %s15, 0
      %p35 = por %p33, %p34
      %p36 = scmp.ne.s32.totalorder %s25, %s28
      %p37 = scmp.eq.s32.totalorder %s20, 1
      %p38 = por %p36, %p37
      %p39 = scmp.ne.s32.totalorder %s28, %s29
      %p40 = scmp.eq.s32.totalorder %s20, 0
      %p41 = por %p39, %p40
      %p42 = scmp.ne.s32.totalorder %s28, %s29
      %p43 = scmp.eq.s32.totalorder %s21, 1
      %p44 = por %p42, %p43
      %p46 = scmp.ne.s32.totalorder %s29, %s45
      %p47 = scmp.eq.s32.totalorder %s21, 0
      %p48 = por %p46, %p47
      %s50 = sadd.s32 %s49, 1
      %p53 = scmp.eq.s32.totalorder %s15, 1
      %p54 = scmp.ne.s32.totalorder %s49, %s51
      %p55 = scmp.eq.s32.totalorder %s15, 0
      %p56 = por %p54, %p55
      %p57 = scmp.ne.s32.totalorder %s49, %s51
      %p58 = scmp.eq.s32.totalorder %s20, 1
      %p59 = por %p57, %p58
      %p60 = scmp.ne.s32.totalorder %s51, %s52
      %p61 = scmp.eq.s32.totalorder %s20, 0
      %p62 = por %p60, %p61
      %p63 = scmp.ne.s32.totalorder %s51, %s52
      %p64 = scmp.eq.s32.totalorder %s21, 1
      %p65 = por %p63, %p64
      %p67 = scmp.ne.s32.totalorder %s52, %s66
      %p68 = scmp.eq.s32.totalorder %s21, 0
      %p69 = por %p67, %p68
      %s71 = sadd.s32 %s70, 1
      %p74 = scmp.eq.s32.totalorder %s15, 1
      %p75 = scmp.ne.s32.totalorder %s70, %s72
      %p76 = scmp.eq.s32.totalorder %s15, 0
      %p77 = por %p75, %p76
      %p78 = scmp.ne.s32.totalorder %s70, %s72
      %p79 = scmp.eq.s32.totalorder %s20, 1
      %p80 = por %p78, %p79
      %p81 = scmp.ne.s32.totalorder %s72, %s73
      %p82 = scmp.eq.s32.totalorder %s20, 0
      %p83 = por %p81, %p82
      %p84 = scmp.ne.s32.totalorder %s72, %s73
      %p85 = scmp.eq.s32.totalorder %s21, 1
      %p86 = por %p84, %p85
      %p88 = scmp.ne.s32.totalorder %s73, %s87
      %p89 = scmp.eq.s32.totalorder %s21, 0
      %p90 = por %p88, %p89
      %s92 = sadd.s32 %s91, 1
      %p95 = scmp.eq.s32.totalorder %s15, 1
      %p96 = scmp.ne.s32.totalorder %s91, %s93
      %p97 = scmp.eq.s32.totalorder %s15, 0
      %p98 = por %p96, %p97
      %p99 = scmp.ne.s32.totalorder %s91, %s93
      %p100 = scmp.eq.s32.totalorder %s20, 1
      %p101 = por %p99, %p100
      %p102 = scmp.ne.s32.totalorder %s93, %s94
      %p103 = scmp.eq.s32.totalorder %s20, 0
      %p104 = por %p102, %p103
      %p105 = scmp.ne.s32.totalorder %s93, %s94
      %p106 = scmp.eq.s32.totalorder %s21, 1
      %p107 = por %p105, %p106
      %p109 = scmp.ne.s32.totalorder %s94, %s108
      %p110 = scmp.eq.s32.totalorder %s21, 0
      %p111 = por %p109, %p110
      %s113 = sadd.s32 %s112, 1
      %p116 = scmp.eq.s32.totalorder %s15, 1
      %p117 = scmp.ne.s32.totalorder %s112, %s114
      %p118 = scmp.eq.s32.totalorder %s15, 0
      %p119 = por %p117, %p118
      %p120 = scmp.ne.s32.totalorder %s112, %s114
      %p121 = scmp.eq.s32.totalorder %s20, 1
      %p122 = por %p120, %p121
      %p123 = scmp.ne.s32.totalorder %s114, %s115
      %p124 = scmp.eq.s32.totalorder %s20, 0
      %p125 = por %p123, %p124
      %p126 = scmp.ne.s32.totalorder %s114, %s115
      %p127 = scmp.eq.s32.totalorder %s21, 1
      %p128 = por %p126, %p127
      %p130 = scmp.ne.s32.totalorder %s115, %s129
      %p131 = scmp.eq.s32.totalorder %s21, 0
      %p132 = por %p130, %p131
      %s133 = ssub.s32 %s15, %s22
      %p134 = scmp.eq.s32.totalorder %s133, 0
      %s136 = sadd.s32 %s135, 1
      %s137 = scalar_select %p134, %s135, %s136
      %p140 = pneg %p134
      %p141 = scmp.eq.s32.totalorder %s15, 1
      %p142 = por %p140, %p141
      %p143 = scmp.ne.s32.totalorder %s135, %s138
      %p144 = scmp.eq.s32.totalorder %s15, 0
      %p145 = por %p143, %p144
      %p146 = scmp.ne.s32.totalorder %s135, %s138
      %p147 = scmp.eq.s32.totalorder %s20, 1
      %p148 = por %p146, %p147
      %p149 = scmp.ne.s32.totalorder %s138, %s139
      %p150 = scmp.eq.s32.totalorder %s20, 0
      %p151 = por %p149, %p150
      %p152 = scmp.ne.s32.totalorder %s138, %s139
      %p153 = scmp.eq.s32.totalorder %s21, 1
      %p154 = por %p152, %p153
      %p156 = scmp.ne.s32.totalorder %s139, %s155
      %p157 = scmp.eq.s32.totalorder %s21, 0
      %p158 = por %p156, %p157
      %p159 = scmp.le.s32.totalorder 1, %s15
      %p160 = scmp.lt.s32.totalorder %s15, 3
      %p161 = pnand %p159, %p160
      %p162 = pneg %p161
      // Predicated region
      $region9: #{model_forward.1} parent=5 // pred_check
        _
      $region10: #{model_forward.1} parent=5 // pred_check_branch
        %164 = sbr.rel (%p161) target = $region12
      $region11: #{model_forward.1} parent=5 // pred_region
        %s165 = ssub.s32 %s15, 1
        // Predicated region
        $region13: #{model_forward.1} parent=11 // pred_check
          %p166 = pneg %p62
        $region14: #{model_forward.1} parent=11 // pred_check_branch
          %168 = sbr.rel (%p166) target = $region16
        $region15: #{model_forward.1} parent=11 // pred_region
          _
        $region16: #{model_forward.1} parent=11 // pred_fallthru
          _
        // Predicated region
        $region17: #{model_forward.1} parent=11 // pred_check
          %p169 = pneg %p83
        $region18: #{model_forward.1} parent=11 // pred_check_branch
          %171 = sbr.rel (%p169) target = $region20
        $region19: #{model_forward.1} parent=11 // pred_region
          _
        $region20: #{model_forward.1} parent=11 // pred_fallthru
          _
        // Predicated region
        $region21: #{model_forward.1} parent=11 // pred_check
          %p172 = pneg %p104
        $region22: #{model_forward.1} parent=11 // pred_check_branch
          %174 = sbr.rel (%p172) target = $region24
        $region23: #{model_forward.1} parent=11 // pred_region
          %s176 = ssub.s32 32768, 32768
          %177 = vsyncadd [#allocation3], %s176
          %s178 = sshll.u32 [#allocation2], 4
          %s179 = int_to_ptr.vmem [resolvable:$true] %s178
          %184 = dma.hbm_to_vmem [thread:$0]  %s3, 32768, %s179, [#allocation3], 128, 128, 8
        $region24: #{model_forward.1} parent=11 // pred_fallthru
          _
        // Predicated region
        $region25: #{model_forward.1} parent=11 // pred_check
          %p185 = pneg %p125
        $region26: #{model_forward.1} parent=11 // pred_check_branch
          %187 = sbr.rel (%p185) target = $region28
        $region27: #{model_forward.1} parent=11 // pred_region
          _
        $region28: #{model_forward.1} parent=11 // pred_fallthru
          _
      $region12: #{model_forward.1} parent=5 // pred_fallthru
        _
      %p188 = scmp.lt.s32.totalorder %s15, 2
      // Predicated region
      $region29: #{model_forward.1} parent=5 // pred_check
        %p189 = pneg %p188
      $region30: #{model_forward.1} parent=5 // pred_check_branch
        %191 = sbr.rel (%p189) target = $region32
      $region31: #{model_forward.1} parent=5 // pred_region
        // Predicated region
        $region33: #{model_forward.1} parent=31 // pred_check
          %p192 = pneg %p35
        $region34: #{model_forward.1} parent=31 // pred_check_branch
          %194 = sbr.rel (%p192) target = $region36
        $region35: #{model_forward.1} parent=31 // pred_region
          %p195 = scmp.lt.s32.totalorder %s15, 1
          %s196 = scalar_select %p195, %s15, 1
          %s197 = smul.addr %s196, 2
          %s198 = smul.addr %s197, 8
          %s199 = scalar_lea.vmem %s0, %s198
        $region36: #{model_forward.1} parent=31 // pred_fallthru
          _
      $region32: #{model_forward.1} parent=5 // pred_fallthru
        _
      %p200 = scmp.le.s32.totalorder 1, %s15
      %p201 = scmp.lt.s32.totalorder %s15, 3
      %p202 = pnand %p200, %p201
      %p203 = pneg %p202
      // Predicated region
      $region37: #{model_forward.1} parent=5 // pred_check
        _
      $region38: #{model_forward.1} parent=5 // pred_check_branch
        %205 = sbr.rel (%p202) target = $region40
      $region39: #{model_forward.1} parent=5 // pred_region
        %s206 = ssub.s32 %s15, 1
        // Predicated region
        $region41: #{model_forward.1} parent=39 // pred_check
          %p207 = pneg %p104
        $region42: #{model_forward.1} parent=39 // pred_check_branch
          %209 = sbr.rel (%p207) target = $region44
        $region43: #{model_forward.1} parent=39 // pred_region
          %210 = dma.done [#allocation3], 32768
        $region44: #{model_forward.1} parent=39 // pred_fallthru
          _
        %p211 = scmp.lt.s32.totalorder %s20, 1
        %s212 = scalar_select %p211, %s20, 1
        %s213 = smul.addr %s212, 2
        %s214 = smul.addr %s213, 8
        %s215 = scalar_lea.vmem %s0, %s214
        %p216 = pneg %p41
        %p217 = pneg %p38
        %p218 = pneg %p62
        %p219 = pneg %p59
        %p220 = pneg %p83
        %p221 = pneg %p80
        %p222 = pneg %p104
        %p223 = pneg %p101
        %p224 = pneg %p125
        %p225 = pneg %p122
        %p226 = pneg %p151
        %p227 = pneg %p148
        %s228 = sand.u32 %s138, 1
        %s229 = scalar_lea.sflag [#allocation4], %s228
        %s230 = sand.u32 %s138, 1
        %s231 = scalar_lea.vmem [#allocation5], %s230
        %p232 = scmp.lt.s32.totalorder %s20, 1
        %s233 = scalar_select %p232, %s20, 1
        %s234 = smul.addr %s233, 2
        %s235 = smul.addr %s234, 8
        %s236 = scalar_lea.vmem %s0, %s235
        %v237 = vld [vmem:[%s236] sm:$0xff]
        %v238 = vld [vmem:[%s236 + $0x8] sm:$0xff]
        %vm241 = vcmask 1040384
        %v242 = vrot.slane %v237, 7
        %v243 = vrot.slane %v238, 7
        %v244 = vsel %vm241, %v242, %v243
        %v247 = vsel %vm241, 0.0, %v242
        %v248 = vsel %vm241, %v243, 0.0
        %v249 = vld [vmem:[%s1] sm:$0xff]
        %v250 = vld [vmem:[%s1 + $0x8] sm:$0xff]
        %v251 = vld [vmem:[%s1 + $0x10] sm:$0xff]
        %v252 = vld [vmem:[%s1 + $0x18] sm:$0xff]
        %v253 = vld [vmem:[%s1 + $0x20] sm:$0xff]
        %v254 = vld [vmem:[%s1 + $0x28] sm:$0xff]
        %v255 = vld [vmem:[%s1 + $0x30] sm:$0xff]
        %v256 = vld [vmem:[%s1 + $0x38] sm:$0xff]
        %s257 = scalar_lea.vmem %s1, 64
        %v258 = vld [vmem:[%s257] sm:$0xff]
        %v259 = vld [vmem:[%s257 + $0x8] sm:$0xff]
        %v260 = vld [vmem:[%s257 + $0x10] sm:$0xff]
        %v261 = vld [vmem:[%s257 + $0x18] sm:$0xff]
        %v262 = vld [vmem:[%s257 + $0x20] sm:$0xff]
        %v263 = vld [vmem:[%s257 + $0x28] sm:$0xff]
        %v264 = vld [vmem:[%s257 + $0x30] sm:$0xff]
        %v265 = vld [vmem:[%s257 + $0x38] sm:$0xff]
        %vm268 = vcmask 1046528
        %v269 = vrot.slane %v247, 1
        %v270 = vrot.slane %v244, 1
        %v271 = vsel %vm268, %v269, %v270
        %v272 = vrot.slane %v248, 1
        %v273 = vsel %vm268, %v270, %v272
        %vm274 = vcmask 523264
        %v275 = vsel %vm274, %v271, 0
        %v277 = vsel %vm274, %v273, 0
        %279 = vmatprep.subr.mxu0 0.0
        %280 = vmatpush1.msra.mxu0 %v258
        %281 = vmatprep.subr.mxu0 0.0
        %282 = vmatpush1.msra.mxu0 %v259
        %283 = vmatprep.subr.mxu0 0.0
        %284 = vmatpush1.msra.mxu0 %v260
        %285 = vmatprep.subr.mxu0 0.0
        %286 = vmatpush1.msra.mxu0 %v261
        %287 = vmatprep.subr.mxu0 0.0
        %288 = vmatpush1.msra.mxu0 %v262
        %289 = vmatprep.subr.mxu0 0.0
        %290 = vmatpush1.msra.mxu0 %v263
        %291 = vmatprep.subr.mxu0 0.0
        %292 = vmatpush1.msra.mxu0 %v264
        %293 = vmatprep.subr.mxu0 0.0
        %294 = vmatpush1.msra.mxu0 %v265
        %295 = vmatprep.subr.mxu0 0.0
        %296 = vmatpush1.msra.mxu0 0.0
        %297 = vmatprep.subr.mxu0 0.0
        %298 = vmatpush1.msra.mxu0 0.0
        %299 = vmatprep.subr.mxu0 0.0
        %300 = vmatpush1.msra.mxu0 0.0
        %301 = vmatprep.subr.mxu0 0.0
        %302 = vmatpush1.msra.mxu0 0.0
        %303 = vmatprep.subr.mxu0 0.0
        %304 = vmatpush1.msra.mxu0 0.0
        %305 = vmatprep.subr.mxu0 0.0
        %306 = vmatpush1.msra.mxu0 0.0
        %307 = vmatprep.subr.mxu0 0.0
        %308 = vmatpush1.msra.mxu0 0.0
        %309 = vmatprep.subr.mxu0 0.0
        %310 = vmatpush1.msra.mxu0 0.0
        %311 = vmatprep.subr.mxu0 0.0
        %312 = vmatpush1.msra.mxu0 0.0
        %313 = vmatprep.subr.mxu0 0.0
        %314 = vmatpush1.msra.mxu0 0.0
        %315 = vmatprep.subr.mxu0 0.0
        %316 = vmatpush1.msra.mxu0 0.0
        %317 = vmatprep.subr.mxu0 0.0
        %318 = vmatpush1.msra.mxu0 0.0
        %319 = vmatprep.subr.mxu0 0.0
        %320 = vmatpush1.msra.mxu0 0.0
        %321 = vmatprep.subr.mxu0 0.0
        %322 = vmatpush1.msra.mxu0 0.0
        %323 = vmatprep.subr.mxu0 0.0
        %324 = vmatpush1.msra.mxu0 0.0
        %325 = vmatprep.subr.mxu0 0.0
        %326 = vmatpush1.msra.mxu0 0.0
        %327 = vmatprep.subr.mxu0 0.0
        %328 = vmatpush1.msra.mxu0 0.0
        %329 = vmatprep.subr.mxu0 0.0
        %330 = vmatpush1.msra.mxu0 0.0
        %331 = vmatprep.subr.mxu0 0.0
        %332 = vmatpush1.msra.mxu0 0.0
        %333 = vmatprep.subr.mxu0 0.0
        %334 = vmatpush1.msra.mxu0 0.0
        %335 = vmatprep.subr.mxu0 0.0
        %336 = vmatpush1.msra.mxu0 0.0
        %337 = vmatprep.subr.mxu0 0.0
        %338 = vmatpush1.msra.mxu0 0.0
        %339 = vmatprep.subr.mxu0 0.0
        %340 = vmatpush1.msra.mxu0 0.0
        %341 = vmatprep.subr.mxu0 0.0
        %342 = vmatpush1.msra.mxu0 0.0
        %343 = vmatprep.mubr.f32.mxu0 0.0
        %344 = vmatmul.mubr.f32.gmra.mrb[0].mxu0 %v275
        %v345 = vpop.f32.mrb[0].mxu0
        %v346 = vadd.f32 0.0, %v345
        %v347 = vpop.f32.mrb[0].mxu0
        %348 = vmatprep.mubr.f32.mxu0 0.0
        %349 = vmatmul.mubr.f32.gmra.mrb[0].mxu0 %v277
        %v350 = vpop.f32.mrb[0].mxu0
        %v351 = vadd.f32 0.0, %v350
        %v352 = vpop.f32.mrb[0].mxu0
        %353 = vdwg.mxu0
        %v354 = vsel %vm274, %v247, 0
        %v356 = vsel %vm274, %v244, 0
        %358 = vmatprep.subr.mxu0 0.0
        %359 = vmatpush1.msra.mxu0 %v249
        %360 = vmatprep.subr.mxu0 0.0
        %361 = vmatpush1.msra.mxu0 %v250
        %362 = vmatprep.subr.mxu0 0.0
        %363 = vmatpush1.msra.mxu0 %v251
        %364 = vmatprep.subr.mxu0 0.0
        %365 = vmatpush1.msra.mxu0 %v252
        %366 = vmatprep.subr.mxu0 0.0
        %367 = vmatpush1.msra.mxu0 %v253
        %368 = vmatprep.subr.mxu0 0.0
        %369 = vmatpush1.msra.mxu0 %v254
        %370 = vmatprep.subr.mxu0 0.0
        %371 = vmatpush1.msra.mxu0 %v255
        %372 = vmatprep.subr.mxu0 0.0
        %373 = vmatpush1.msra.mxu0 %v256
        %374 = vmatprep.subr.mxu0 0.0
        %375 = vmatpush1.msra.mxu0 0.0
        %376 = vmatprep.subr.mxu0 0.0
        %377 = vmatpush1.msra.mxu0 0.0
        %378 = vmatprep.subr.mxu0 0.0
        %379 = vmatpush1.msra.mxu0 0.0
        %380 = vmatprep.subr.mxu0 0.0
        %381 = vmatpush1.msra.mxu0 0.0
        %382 = vmatprep.subr.mxu0 0.0
        %383 = vmatpush1.msra.mxu0 0.0
        %384 = vmatprep.subr.mxu0 0.0
        %385 = vmatpush1.msra.mxu0 0.0
        %386 = vmatprep.subr.mxu0 0.0
        %387 = vmatpush1.msra.mxu0 0.0
        %388 = vmatprep.subr.mxu0 0.0
        %389 = vmatpush1.msra.mxu0 0.0
        %390 = vmatprep.subr.mxu0 0.0
        %391 = vmatpush1.msra.mxu0 0.0
        %392 = vmatprep.subr.mxu0 0.0
        %393 = vmatpush1.msra.mxu0 0.0
        %394 = vmatprep.subr.mxu0 0.0
        %395 = vmatpush1.msra.mxu0 0.0
        %396 = vmatprep.subr.mxu0 0.0
        %397 = vmatpush1.msra.mxu0 0.0
        %398 = vmatprep.subr.mxu0 0.0
        %399 = vmatpush1.msra.mxu0 0.0
        %400 = vmatprep.subr.mxu0 0.0
        %401 = vmatpush1.msra.mxu0 0.0
        %402 = vmatprep.subr.mxu0 0.0
        %403 = vmatpush1.msra.mxu0 0.0
        %404 = vmatprep.subr.mxu0 0.0
        %405 = vmatpush1.msra.mxu0 0.0
        %406 = vmatprep.subr.mxu0 0.0
        %407 = vmatpush1.msra.mxu0 0.0
        %408 = vmatprep.subr.mxu0 0.0
        %409 = vmatpush1.msra.mxu0 0.0
        %410 = vmatprep.subr.mxu0 0.0
        %411 = vmatpush1.msra.mxu0 0.0
        %412 = vmatprep.subr.mxu0 0.0
        %413 = vmatpush1.msra.mxu0 0.0
        %414 = vmatprep.subr.mxu0 0.0
        %415 = vmatpush1.msra.mxu0 0.0
        %416 = vmatprep.subr.mxu0 0.0
        %417 = vmatpush1.msra.mxu0 0.0
        %418 = vmatprep.subr.mxu0 0.0
        %419 = vmatpush1.msra.mxu0 0.0
        %420 = vmatprep.subr.mxu0 0.0
        %421 = vmatpush1.msra.mxu0 0.0
        %422 = vmatprep.mubr.f32.mxu0 0.0
        %423 = vmatmul.mubr.f32.gmra.mrb[0].mxu0 %v354
        %v424 = vpop.f32.mrb[0].mxu0
        %v425 = vadd.f32 %v346, %v424
        %v426 = vpop.f32.mrb[0].mxu0
        %427 = vmatprep.mubr.f32.mxu0 0.0
        %428 = vmatmul.mubr.f32.gmra.mrb[0].mxu0 %v356
        %v429 = vpop.f32.mrb[0].mxu0
        %v430 = vadd.f32 %v351, %v429
        %v431 = vpop.f32.mrb[0].mxu0
        %432 = vdwg.mxu0
        %s433 = scalar_lea.vmem %s1, 128
        %v434 = vld [vmem:[%s433] sm:$0xff]
        %v435 = vld [vmem:[%s433 + $0x8] sm:$0xff]
        %v436 = vld [vmem:[%s433 + $0x10] sm:$0xff]
        %v437 = vld [vmem:[%s433 + $0x18] sm:$0xff]
        %v438 = vld [vmem:[%s433 + $0x20] sm:$0xff]
        %v439 = vld [vmem:[%s433 + $0x28] sm:$0xff]
        %v440 = vld [vmem:[%s433 + $0x30] sm:$0xff]
        %v441 = vld [vmem:[%s433 + $0x38] sm:$0xff]
        %vm442 = vcmask 1045504
        %v443 = vrot.slane %v247, 2
        %v444 = vrot.slane %v244, 2
        %v445 = vsel %vm442, %v443, %v444
        %v446 = vrot.slane %v248, 2
        %v447 = vsel %vm442, %v444, %v446
        %v448 = vsel %vm274, %v445, 0
        %v450 = vsel %vm274, %v447, 0
        %452 = vmatprep.subr.mxu0 0.0
        %453 = vmatpush1.msra.mxu0 %v434
        %454 = vmatprep.subr.mxu0 0.0
        %455 = vmatpush1.msra.mxu0 %v435
        %456 = vmatprep.subr.mxu0 0.0
        %457 = vmatpush1.msra.mxu0 %v436
        %458 = vmatprep.subr.mxu0 0.0
        %459 = vmatpush1.msra.mxu0 %v437
        %460 = vmatprep.subr.mxu0 0.0
        %461 = vmatpush1.msra.mxu0 %v438
        %462 = vmatprep.subr.mxu0 0.0
        %463 = vmatpush1.msra.mxu0 %v439
        %464 = vmatprep.subr.mxu0 0.0
        %465 = vmatpush1.msra.mxu0 %v440
        %466 = vmatprep.subr.mxu0 0.0
        %467 = vmatpush1.msra.mxu0 %v441
        %468 = vmatprep.subr.mxu0 0.0
        %469 = vmatpush1.msra.mxu0 0.0
        %470 = vmatprep.subr.mxu0 0.0
        %471 = vmatpush1.msra.mxu0 0.0
        %472 = vmatprep.subr.mxu0 0.0
        %473 = vmatpush1.msra.mxu0 0.0
        %474 = vmatprep.subr.mxu0 0.0
        %475 = vmatpush1.msra.mxu0 0.0
        %476 = vmatprep.subr.mxu0 0.0
        %477 = vmatpush1.msra.mxu0 0.0
        %478 = vmatprep.subr.mxu0 0.0
        %479 = vmatpush1.msra.mxu0 0.0
        %480 = vmatprep.subr.mxu0 0.0
        %481 = vmatpush1.msra.mxu0 0.0
        %482 = vmatprep.subr.mxu0 0.0
        %483 = vmatpush1.msra.mxu0 0.0
        %484 = vmatprep.subr.mxu0 0.0
        %485 = vmatpush1.msra.mxu0 0.0
        %486 = vmatprep.subr.mxu0 0.0
        %487 = vmatpush1.msra.mxu0 0.0
        %488 = vmatprep.subr.mxu0 0.0
        %489 = vmatpush1.msra.mxu0 0.0
        %490 = vmatprep.subr.mxu0 0.0
        %491 = vmatpush1.msra.mxu0 0.0
        %492 = vmatprep.subr.mxu0 0.0
        %493 = vmatpush1.msra.mxu0 0.0
        %494 = vmatprep.subr.mxu0 0.0
        %495 = vmatpush1.msra.mxu0 0.0
        %496 = vmatprep.subr.mxu0 0.0
        %497 = vmatpush1.msra.mxu0 0.0
        %498 = vmatprep.subr.mxu0 0.0
        %499 = vmatpush1.msra.mxu0 0.0
        %500 = vmatprep.subr.mxu0 0.0
        %501 = vmatpush1.msra.mxu0 0.0
        %502 = vmatprep.subr.mxu0 0.0
        %503 = vmatpush1.msra.mxu0 0.0
        %504 = vmatprep.subr.mxu0 0.0
        %505 = vmatpush1.msra.mxu0 0.0
        %506 = vmatprep.subr.mxu0 0.0
        %507 = vmatpush1.msra.mxu0 0.0
        %508 = vmatprep.subr.mxu0 0.0
        %509 = vmatpush1.msra.mxu0 0.0
        %510 = vmatprep.subr.mxu0 0.0
        %511 = vmatpush1.msra.mxu0 0.0
        %512 = vmatprep.subr.mxu0 0.0
        %513 = vmatpush1.msra.mxu0 0.0
        %514 = vmatprep.subr.mxu0 0.0
        %515 = vmatpush1.msra.mxu0 0.0
        %516 = vmatprep.mubr.f32.mxu0 0.0
        %517 = vmatmul.mubr.f32.gmra.mrb[0].mxu0 %v448
        %v518 = vpop.f32.mrb[0].mxu0
        %v519 = vadd.f32 0.0, %v518
        %v520 = vpop.f32.mrb[0].mxu0
        %521 = vmatprep.mubr.f32.mxu0 0.0
        %522 = vmatmul.mubr.f32.gmra.mrb[0].mxu0 %v450
        %v523 = vpop.f32.mrb[0].mxu0
        %v524 = vadd.f32 0.0, %v523
        %v525 = vpop.f32.mrb[0].mxu0
        %526 = vdwg.mxu0
        %v527 = vadd.f32 %v425, %v519
        %v528 = vadd.f32 %v430, %v524
        %v529 = vld [vmem:[%s2] sm:$0x1]
        %v531 = vlaneseq
        %v532 = vshrl.u32 %v531, 7
        %v533 = vsub.s32 0, %v532
        %v534 = vrot.slane %v529, %v533
        %v536 = vadd.f32 %v527, %v534
        %v537 = vadd.f32 %v528, %v534
        %v538 = vmax.f32 %v536, 0.0
        %v539 = vmax.f32 %v537, 0.0
        %540 = vrot.lane.b32.xlu0 %v538, 120
        %v541 = vpop.permute.xlu0 %540
        %542 = vrot.lane.b32.xlu0 %v539, 120
        %v543 = vpop.permute.xlu0 %542
        %v544 = vmax.f32 %v538, %v541
        %v545 = vmax.f32 %v539, %v543
        %v546 = vrot.slane %v544, 1
        %v547 = vrot.slane %v545, 1
        %v548 = vlaneseq
        %v549 = vshrl.u32 %v548, 7
        %vm550 = vcmp.lt.s32.totalorder %v549, 7
        %v551 = vsel %vm550, %v546, %v547
        %v552 = vsel %vm550, %v547, %v546
        %v553 = vmax.f32 %v544, %v551
        %v554 = vmax.f32 %v545, %v552
        %v555 = vld [vmem:[#allocation2] sm:$0xff]
        %v556 = vld [vmem:[#allocation2 + $0x8] sm:$0xff]
        %v557 = vld [vmem:[#allocation2 + $0x10] sm:$0xff]
        %v558 = vld [vmem:[#allocation2 + $0x18] sm:$0xff]
        %v559 = vld [vmem:[#allocation2 + $0x20] sm:$0xff]
        %v560 = vld [vmem:[#allocation2 + $0x28] sm:$0xff]
        %v561 = vld [vmem:[#allocation2 + $0x30] sm:$0xff]
        %v562 = vld [vmem:[#allocation2 + $0x38] sm:$0xff]
        %v563 = vld [vmem:[#allocation2 + $0x40] sm:$0xff]
        %v564 = vld [vmem:[#allocation2 + $0x48] sm:$0xff]
        %v565 = vld [vmem:[#allocation2 + $0x50] sm:$0xff]
        %v566 = vld [vmem:[#allocation2 + $0x58] sm:$0xff]
        %v567 = vld [vmem:[#allocation2 + $0x60] sm:$0xff]
        %v568 = vld [vmem:[#allocation2 + $0x68] sm:$0xff]
        %v569 = vld [vmem:[#allocation2 + $0x70] sm:$0xff]
        %v570 = vld [vmem:[#allocation2 + $0x78] sm:$0xff]
        %v571 = vld [vmem:[#allocation2 + $0x80] sm:$0xff]
        %v572 = vld [vmem:[#allocation2 + $0x88] sm:$0xff]
        %v573 = vld [vmem:[#allocation2 + $0x90] sm:$0xff]
        %v574 = vld [vmem:[#allocation2 + $0x98] sm:$0xff]
        %v575 = vld [vmem:[#allocation2 + $0xa0] sm:$0xff]
        %v576 = vld [vmem:[#allocation2 + $0xa8] sm:$0xff]
        %v577 = vld [vmem:[#allocation2 + $0xb0] sm:$0xff]
        %v578 = vld [vmem:[#allocation2 + $0xb8] sm:$0xff]
        %v579 = vld [vmem:[#allocation2 + $0xc0] sm:$0xff]
        %v580 = vld [vmem:[#allocation2 + $0xc8] sm:$0xff]
        %v581 = vld [vmem:[#allocation2 + $0xd0] sm:$0xff]
        %v582 = vld [vmem:[#allocation2 + $0xd8] sm:$0xff]
        %v583 = vld [vmem:[#allocation2 + $0xe0] sm:$0xff]
        %v584 = vld [vmem:[#allocation2 + $0xe8] sm:$0xff]
        %v585 = vld [vmem:[#allocation2 + $0xf0] sm:$0xff]
        %v586 = vld [vmem:[#allocation2 + $0xf8] sm:$0xff]
        %v587 = vld [vmem:[#allocation2 + $0x100] sm:$0xff]
        %v588 = vld [vmem:[#allocation2 + $0x108] sm:$0xff]
        %v589 = vld [vmem:[#allocation2 + $0x110] sm:$0xff]
        %v590 = vld [vmem:[#allocation2 + $0x118] sm:$0xff]
        %v591 = vld [vmem:[#allocation2 + $0x120] sm:$0xff]
        %v592 = vld [vmem:[#allocation2 + $0x128] sm:$0xff]
        %v593 = vld [vmem:[#allocation2 + $0x130] sm:$0xff]
        %v594 = vld [vmem:[#allocation2 + $0x138] sm:$0xff]
        %v595 = vld [vmem:[#allocation2 + $0x140] sm:$0xff]
        %v596 = vld [vmem:[#allocation2 + $0x148] sm:$0xff]
        %v597 = vld [vmem:[#allocation2 + $0x150] sm:$0xff]
        %v598 = vld [vmem:[#allocation2 + $0x158] sm:$0xff]
        %v599 = vld [vmem:[#allocation2 + $0x160] sm:$0xff]
        %v600 = vld [vmem:[#allocation2 + $0x168] sm:$0xff]
        %v601 = vld [vmem:[#allocation2 + $0x170] sm:$0xff]
        %v602 = vld [vmem:[#allocation2 + $0x178] sm:$0xff]
        %v603 = vld [vmem:[#allocation2 + $0x180] sm:$0xff]
        %v604 = vld [vmem:[#allocation2 + $0x188] sm:$0xff]
        %v605 = vld [vmem:[#allocation2 + $0x190] sm:$0xff]
        %v606 = vld [vmem:[#allocation2 + $0x198] sm:$0xff]
        %v607 = vld [vmem:[#allocation2 + $0x1a0] sm:$0xff]
        %v608 = vld [vmem:[#allocation2 + $0x1a8] sm:$0xff]
        %v609 = vld [vmem:[#allocation2 + $0x1b0] sm:$0xff]
        %v610 = vld [vmem:[#allocation2 + $0x1b8] sm:$0xff]
        %v611 = vld [vmem:[#allocation2 + $0x1c0] sm:$0xff]
        %v612 = vld [vmem:[#allocation2 + $0x1c8] sm:$0xff]
        %v613 = vld [vmem:[#allocation2 + $0x1d0] sm:$0xff]
        %v614 = vld [vmem:[#allocation2 + $0x1d8] sm:$0xff]
        %v615 = vld [vmem:[#allocation2 + $0x1e0] sm:$0xff]
        %v616 = vld [vmem:[#allocation2 + $0x1e8] sm:$0xff]
        %v617 = vld [vmem:[#allocation2 + $0x1f0] sm:$0xff]
        %v618 = vld [vmem:[#allocation2 + $0x1f8] sm:$0xff]
        %v619 = vld [vmem:[#allocation2 + $0x200] sm:$0xff]
        %v620 = vld [vmem:[#allocation2 + $0x208] sm:$0xff]
        %v621 = vld [vmem:[#allocation2 + $0x210] sm:$0xff]
        %v622 = vld [vmem:[#allocation2 + $0x218] sm:$0xff]
        %v623 = vld [vmem:[#allocation2 + $0x220] sm:$0xff]
        %v624 = vld [vmem:[#allocation2 + $0x228] sm:$0xff]
        %v625 = vld [vmem:[#allocation2 + $0x230] sm:$0xff]
        %v626 = vld [vmem:[#allocation2 + $0x238] sm:$0xff]
        %v627 = vld [vmem:[#allocation2 + $0x240] sm:$0xff]
        %v628 = vld [vmem:[#allocation2 + $0x248] sm:$0xff]
        %v629 = vld [vmem:[#allocation2 + $0x250] sm:$0xff]
        %v630 = vld [vmem:[#allocation2 + $0x258] sm:$0xff]
        %v631 = vld [vmem:[#allocation2 + $0x260] sm:$0xff]
        %v632 = vld [vmem:[#allocation2 + $0x268] sm:$0xff]
        %v633 = vld [vmem:[#allocation2 + $0x270] sm:$0xff]
        %v634 = vld [vmem:[#allocation2 + $0x278] sm:$0xff]
        %v635 = vld [vmem:[#allocation2 + $0x280] sm:$0xff]
        %v636 = vld [vmem:[#allocation2 + $0x288] sm:$0xff]
        %v637 = vld [vmem:[#allocation2 + $0x290] sm:$0xff]
        %v638 = vld [vmem:[#allocation2 + $0x298] sm:$0xff]
        %v639 = vld [vmem:[#allocation2 + $0x2a0] sm:$0xff]
        %v640 = vld [vmem:[#allocation2 + $0x2a8] sm:$0xff]
        %v641 = vld [vmem:[#allocation2 + $0x2b0] sm:$0xff]
        %v642 = vld [vmem:[#allocation2 + $0x2b8] sm:$0xff]
        %v643 = vld [vmem:[#allocation2 + $0x2c0] sm:$0xff]
        %v644 = vld [vmem:[#allocation2 + $0x2c8] sm:$0xff]
        %v645 = vld [vmem:[#allocation2 + $0x2d0] sm:$0xff]
        %v646 = vld [vmem:[#allocation2 + $0x2d8] sm:$0xff]
        %v647 = vld [vmem:[#allocation2 + $0x2e0] sm:$0xff]
        %v648 = vld [vmem:[#allocation2 + $0x2e8] sm:$0xff]
        %v649 = vld [vmem:[#allocation2 + $0x2f0] sm:$0xff]
        %v650 = vld [vmem:[#allocation2 + $0x2f8] sm:$0xff]
        %v651 = vld [vmem:[#allocation2 + $0x300] sm:$0xff]
        %v652 = vld [vmem:[#allocation2 + $0x308] sm:$0xff]
        %v653 = vld [vmem:[#allocation2 + $0x310] sm:$0xff]
        %v654 = vld [vmem:[#allocation2 + $0x318] sm:$0xff]
        %v655 = vld [vmem:[#allocation2 + $0x320] sm:$0xff]
        %v656 = vld [vmem:[#allocation2 + $0x328] sm:$0xff]
        %v657 = vld [vmem:[#allocation2 + $0x330] sm:$0xff]
        %v658 = vld [vmem:[#allocation2 + $0x338] sm:$0xff]
        %v659 = vld [vmem:[#allocation2 + $0x340] sm:$0xff]
        %v660 = vld [vmem:[#allocation2 + $0x348] sm:$0xff]
        %v661 = vld [vmem:[#allocation2 + $0x350] sm:$0xff]
        %v662 = vld [vmem:[#allocation2 + $0x358] sm:$0xff]
        %v663 = vld [vmem:[#allocation2 + $0x360] sm:$0xff]
        %v664 = vld [vmem:[#allocation2 + $0x368] sm:$0xff]
        %v665 = vld [vmem:[#allocation2 + $0x370] sm:$0xff]
        %v666 = vld [vmem:[#allocation2 + $0x378] sm:$0xff]
        %v667 = vld [vmem:[#allocation2 + $0x380] sm:$0xff]
        %v668 = vld [vmem:[#allocation2 + $0x388] sm:$0xff]
        %v669 = vld [vmem:[#allocation2 + $0x390] sm:$0xff]
        %v670 = vld [vmem:[#allocation2 + $0x398] sm:$0xff]
        %v671 = vld [vmem:[#allocation2 + $0x3a0] sm:$0xff]
        %v672 = vld [vmem:[#allocation2 + $0x3a8] sm:$0xff]
        %v673 = vld [vmem:[#allocation2 + $0x3b0] sm:$0xff]
        %v674 = vld [vmem:[#allocation2 + $0x3b8] sm:$0xff]
        %v675 = vld [vmem:[#allocation2 + $0x3c0] sm:$0xff]
        %v676 = vld [vmem:[#allocation2 + $0x3c8] sm:$0xff]
        %v677 = vld [vmem:[#allocation2 + $0x3d0] sm:$0xff]
        %v678 = vld [vmem:[#allocation2 + $0x3d8] sm:$0xff]
        %v679 = vld [vmem:[#allocation2 + $0x3e0] sm:$0xff]
        %v680 = vld [vmem:[#allocation2 + $0x3e8] sm:$0xff]
        %v681 = vld [vmem:[#allocation2 + $0x3f0] sm:$0xff]
        %v682 = vld [vmem:[#allocation2 + $0x3f8] sm:$0xff]
        %v683 = vld [vmem:[#allocation2 + $0x400] sm:$0xff]
        %v684 = vld [vmem:[#allocation2 + $0x408] sm:$0xff]
        %v685 = vld [vmem:[#allocation2 + $0x410] sm:$0xff]
        %v686 = vld [vmem:[#allocation2 + $0x418] sm:$0xff]
        %v687 = vld [vmem:[#allocation2 + $0x420] sm:$0xff]
        %v688 = vld [vmem:[#allocation2 + $0x428] sm:$0xff]
        %v689 = vld [vmem:[#allocation2 + $0x430] sm:$0xff]
        %v690 = vld [vmem:[#allocation2 + $0x438] sm:$0xff]
        %v691 = vld [vmem:[#allocation2 + $0x440] sm:$0xff]
        %v692 = vld [vmem:[#allocation2 + $0x448] sm:$0xff]
        %v693 = vld [vmem:[#allocation2 + $0x450] sm:$0xff]
        %v694 = vld [vmem:[#allocation2 + $0x458] sm:$0xff]
        %v695 = vld [vmem:[#allocation2 + $0x460] sm:$0xff]
        %v696 = vld [vmem:[#allocation2 + $0x468] sm:$0xff]
        %v697 = vld [vmem:[#allocation2 + $0x470] sm:$0xff]
        %v698 = vld [vmem:[#allocation2 + $0x478] sm:$0xff]
        %v699 = vld [vmem:[#allocation2 + $0x480] sm:$0xff]
        %v700 = vld [vmem:[#allocation2 + $0x488] sm:$0xff]
        %v701 = vld [vmem:[#allocation2 + $0x490] sm:$0xff]
        %v702 = vld [vmem:[#allocation2 + $0x498] sm:$0xff]
        %v703 = vld [vmem:[#allocation2 + $0x4a0] sm:$0xff]
        %v704 = vld [vmem:[#allocation2 + $0x4a8] sm:$0xff]
        %v705 = vld [vmem:[#allocation2 + $0x4b0] sm:$0xff]
        %v706 = vld [vmem:[#allocation2 + $0x4b8] sm:$0xff]
        %v707 = vld [vmem:[#allocation2 + $0x4c0] sm:$0xff]
        %v708 = vld [vmem:[#allocation2 + $0x4c8] sm:$0xff]
        %v709 = vld [vmem:[#allocation2 + $0x4d0] sm:$0xff]
        %v710 = vld [vmem:[#allocation2 + $0x4d8] sm:$0xff]
        %v711 = vld [vmem:[#allocation2 + $0x4e0] sm:$0xff]
        %v712 = vld [vmem:[#allocation2 + $0x4e8] sm:$0xff]
        %v713 = vld [vmem:[#allocation2 + $0x4f0] sm:$0xff]
        %v714 = vld [vmem:[#allocation2 + $0x4f8] sm:$0xff]
        %v715 = vld [vmem:[#allocation2 + $0x500] sm:$0xff]
        %v716 = vld [vmem:[#allocation2 + $0x508] sm:$0xff]
        %v717 = vld [vmem:[#allocation2 + $0x510] sm:$0xff]
        %v718 = vld [vmem:[#allocation2 + $0x518] sm:$0xff]
        %v719 = vld [vmem:[#allocation2 + $0x520] sm:$0xff]
        %v720 = vld [vmem:[#allocation2 + $0x528] sm:$0xff]
        %v721 = vld [vmem:[#allocation2 + $0x530] sm:$0xff]
        %v722 = vld [vmem:[#allocation2 + $0x538] sm:$0xff]
        %v723 = vld [vmem:[#allocation2 + $0x540] sm:$0xff]
        %v724 = vld [vmem:[#allocation2 + $0x548] sm:$0xff]
        %v725 = vld [vmem:[#allocation2 + $0x550] sm:$0xff]
        %v726 = vld [vmem:[#allocation2 + $0x558] sm:$0xff]
        %v727 = vld [vmem:[#allocation2 + $0x560] sm:$0xff]
        %v728 = vld [vmem:[#allocation2 + $0x568] sm:$0xff]
        %v729 = vld [vmem:[#allocation2 + $0x570] sm:$0xff]
        %v730 = vld [vmem:[#allocation2 + $0x578] sm:$0xff]
        %v731 = vld [vmem:[#allocation2 + $0x580] sm:$0xff]
        %v732 = vld [vmem:[#allocation2 + $0x588] sm:$0xff]
        %v733 = vld [vmem:[#allocation2 + $0x590] sm:$0xff]
        %v734 = vld [vmem:[#allocation2 + $0x598] sm:$0xff]
        %v735 = vld [vmem:[#allocation2 + $0x5a0] sm:$0xff]
        %v736 = vld [vmem:[#allocation2 + $0x5a8] sm:$0xff]
        %v737 = vld [vmem:[#allocation2 + $0x5b0] sm:$0xff]
        %v738 = vld [vmem:[#allocation2 + $0x5b8] sm:$0xff]
        %v739 = vld [vmem:[#allocation2 + $0x5c0] sm:$0xff]
        %v740 = vld [vmem:[#allocation2 + $0x5c8] sm:$0xff]
        %v741 = vld [vmem:[#allocation2 + $0x5d0] sm:$0xff]
        %v742 = vld [vmem:[#allocation2 + $0x5d8] sm:$0xff]
        %v743 = vld [vmem:[#allocation2 + $0x5e0] sm:$0xff]
        %v744 = vld [vmem:[#allocation2 + $0x5e8] sm:$0xff]
        %v745 = vld [vmem:[#allocation2 + $0x5f0] sm:$0xff]
        %v746 = vld [vmem:[#allocation2 + $0x5f8] sm:$0xff]
        %v747 = vld [vmem:[#allocation2 + $0x600] sm:$0xff]
        %v748 = vld [vmem:[#allocation2 + $0x608] sm:$0xff]
        %v749 = vld [vmem:[#allocation2 + $0x610] sm:$0xff]
        %v750 = vld [vmem:[#allocation2 + $0x618] sm:$0xff]
        %v751 = vld [vmem:[#allocation2 + $0x620] sm:$0xff]
        %v752 = vld [vmem:[#allocation2 + $0x628] sm:$0xff]
        %v753 = vld [vmem:[#allocation2 + $0x630] sm:$0xff]
        %v754 = vld [vmem:[#allocation2 + $0x638] sm:$0xff]
        %v755 = vld [vmem:[#allocation2 + $0x640] sm:$0xff]
        %v756 = vld [vmem:[#allocation2 + $0x648] sm:$0xff]
        %v757 = vld [vmem:[#allocation2 + $0x650] sm:$0xff]
        %v758 = vld [vmem:[#allocation2 + $0x658] sm:$0xff]
        %v759 = vld [vmem:[#allocation2 + $0x660] sm:$0xff]
        %v760 = vld [vmem:[#allocation2 + $0x668] sm:$0xff]
        %v761 = vld [vmem:[#allocation2 + $0x670] sm:$0xff]
        %v762 = vld [vmem:[#allocation2 + $0x678] sm:$0xff]
        %v763 = vld [vmem:[#allocation2 + $0x680] sm:$0xff]
        %v764 = vld [vmem:[#allocation2 + $0x688] sm:$0xff]
        %v765 = vld [vmem:[#allocation2 + $0x690] sm:$0xff]
        %v766 = vld [vmem:[#allocation2 + $0x698] sm:$0xff]
        %v767 = vld [vmem:[#allocation2 + $0x6a0] sm:$0xff]
        %v768 = vld [vmem:[#allocation2 + $0x6a8] sm:$0xff]
        %v769 = vld [vmem:[#allocation2 + $0x6b0] sm:$0xff]
        %v770 = vld [vmem:[#allocation2 + $0x6b8] sm:$0xff]
        %v771 = vld [vmem:[#allocation2 + $0x6c0] sm:$0xff]
        %v772 = vld [vmem:[#allocation2 + $0x6c8] sm:$0xff]
        %v773 = vld [vmem:[#allocation2 + $0x6d0] sm:$0xff]
        %v774 = vld [vmem:[#allocation2 + $0x6d8] sm:$0xff]
        %v775 = vld [vmem:[#allocation2 + $0x6e0] sm:$0xff]
        %v776 = vld [vmem:[#allocation2 + $0x6e8] sm:$0xff]
        %v777 = vld [vmem:[#allocation2 + $0x6f0] sm:$0xff]
        %v778 = vld [vmem:[#allocation2 + $0x6f8] sm:$0xff]
        %v779 = vld [vmem:[#allocation2 + $0x700] sm:$0xff]
        %v780 = vld [vmem:[#allocation2 + $0x708] sm:$0xff]
        %v781 = vld [vmem:[#allocation2 + $0x710] sm:$0xff]
        %v782 = vld [vmem:[#allocation2 + $0x718] sm:$0xff]
        %v783 = vld [vmem:[#allocation2 + $0x720] sm:$0xff]
        %v784 = vld [vmem:[#allocation2 + $0x728] sm:$0xff]
        %v785 = vld [vmem:[#allocation2 + $0x730] sm:$0xff]
        %v786 = vld [vmem:[#allocation2 + $0x738] sm:$0xff]
        %v787 = vld [vmem:[#allocation2 + $0x740] sm:$0xff]
        %v788 = vld [vmem:[#allocation2 + $0x748] sm:$0xff]
        %v789 = vld [vmem:[#allocation2 + $0x750] sm:$0xff]
        %v790 = vld [vmem:[#allocation2 + $0x758] sm:$0xff]
        %v791 = vld [vmem:[#allocation2 + $0x760] sm:$0xff]
        %v792 = vld [vmem:[#allocation2 + $0x768] sm:$0xff]
        %v793 = vld [vmem:[#allocation2 + $0x770] sm:$0xff]
        %v794 = vld [vmem:[#allocation2 + $0x778] sm:$0xff]
        %v795 = vld [vmem:[#allocation2 + $0x780] sm:$0xff]
        %v796 = vld [vmem:[#allocation2 + $0x788] sm:$0xff]
        %v797 = vld [vmem:[#allocation2 + $0x790] sm:$0xff]
        %v798 = vld [vmem:[#allocation2 + $0x798] sm:$0xff]
        %v799 = vld [vmem:[#allocation2 + $0x7a0] sm:$0xff]
        %v800 = vld [vmem:[#allocation2 + $0x7a8] sm:$0xff]
        %v801 = vld [vmem:[#allocation2 + $0x7b0] sm:$0xff]
        %v802 = vld [vmem:[#allocation2 + $0x7b8] sm:$0xff]
        %v803 = vld [vmem:[#allocation2 + $0x7c0] sm:$0xff]
        %v804 = vld [vmem:[#allocation2 + $0x7c8] sm:$0xff]
        %v805 = vld [vmem:[#allocation2 + $0x7d0] sm:$0xff]
        %v806 = vld [vmem:[#allocation2 + $0x7d8] sm:$0xff]
        %v807 = vld [vmem:[#allocation2 + $0x7e0] sm:$0xff]
        %v808 = vld [vmem:[#allocation2 + $0x7e8] sm:$0xff]
        %v809 = vld [vmem:[#allocation2 + $0x7f0] sm:$0xff]
        %v810 = vld [vmem:[#allocation2 + $0x7f8] sm:$0xff]
        %v811 = vld [vmem:[%s4] sm:$0x1]
        %v814 = vlaneseq
        %v815 = vshrl.u32 %v814, 7
        %v816 = vsub.s32 0, %v815
        %v817 = vrot.slane %v553, %v816
        %v818 = vlaneseq
        %v819 = vshrl.u32 %v818, 7
        %v820 = vsub.s32 1, %v819
        %v821 = vrot.slane %v553, %v820
        %v822 = vlaneseq
        %v823 = vshrl.u32 %v822, 7
        %v824 = vsub.s32 2, %v823
        %v825 = vrot.slane %v553, %v824
        %v826 = vlaneseq
        %v827 = vshrl.u32 %v826, 7
        %v828 = vsub.s32 3, %v827
        %v829 = vrot.slane %v553, %v828
        %v830 = vlaneseq
        %v831 = vshrl.u32 %v830, 7
        %v832 = vsub.s32 4, %v831
        %v833 = vrot.slane %v553, %v832
        %v834 = vlaneseq
        %v835 = vshrl.u32 %v834, 7
        %v836 = vsub.s32 5, %v835
        %v837 = vrot.slane %v553, %v836
        %v838 = vlaneseq
        %v839 = vshrl.u32 %v838, 7
        %v840 = vsub.s32 6, %v839
        %v841 = vrot.slane %v553, %v840
        %v842 = vlaneseq
        %v843 = vshrl.u32 %v842, 7
        %v844 = vsub.s32 7, %v843
        %v845 = vrot.slane %v553, %v844
        %v846 = vlaneseq
        %v847 = vshrl.u32 %v846, 7
        %v848 = vsub.s32 0, %v847
        %v849 = vrot.slane %v554, %v848
        %v850 = vlaneseq
        %v851 = vshrl.u32 %v850, 7
        %v852 = vsub.s32 1, %v851
        %v853 = vrot.slane %v554, %v852
        %v854 = vlaneseq
        %v855 = vshrl.u32 %v854, 7
        %v856 = vsub.s32 2, %v855
        %v857 = vrot.slane %v554, %v856
        %v858 = vlaneseq
        %v859 = vshrl.u32 %v858, 7
        %v860 = vsub.s32 3, %v859
        %v861 = vrot.slane %v554, %v860
        %v862 = vlaneseq
        %v863 = vshrl.u32 %v862, 7
        %v864 = vsub.s32 4, %v863
        %v865 = vrot.slane %v554, %v864
        %v866 = vlaneseq
        %v867 = vshrl.u32 %v866, 7
        %v868 = vsub.s32 5, %v867
        %v869 = vrot.slane %v554, %v868
        %v870 = vlaneseq
        %v871 = vshrl.u32 %v870, 7
        %v872 = vsub.s32 6, %v871
        %v873 = vrot.slane %v554, %v872
        %v874 = vlaneseq
        %v875 = vshrl.u32 %v874, 7
        %v876 = vsub.s32 7, %v875
        %v877 = vrot.slane %v554, %v876
        %894 = vmatprep.subr.mxu0 0.0
        %895 = vmatpush1.msra.mxu0 %v555
        %896 = vmatprep.subr.mxu0 0.0
        %897 = vmatpush1.msra.mxu0 %v556
        %898 = vmatprep.subr.mxu0 0.0
        %899 = vmatpush1.msra.mxu0 %v557
        %900 = vmatprep.subr.mxu0 0.0
        %901 = vmatpush1.msra.mxu0 %v558
        %902 = vmatprep.subr.mxu0 0.0
        %903 = vmatpush1.msra.mxu0 %v559
        %904 = vmatprep.subr.mxu0 0.0
        %905 = vmatpush1.msra.mxu0 %v560
        %906 = vmatprep.subr.mxu0 0.0
        %907 = vmatpush1.msra.mxu0 %v561
        %908 = vmatprep.subr.mxu0 0.0
        %909 = vmatpush1.msra.mxu0 %v562
        %910 = vmatprep.subr.mxu0 0.0
        %911 = vmatpush1.msra.mxu0 %v563
        %912 = vmatprep.subr.mxu0 0.0
        %913 = vmatpush1.msra.mxu0 %v564
        %914 = vmatprep.subr.mxu0 0.0
        %915 = vmatpush1.msra.mxu0 %v565
        %916 = vmatprep.subr.mxu0 0.0
        %917 = vmatpush1.msra.mxu0 %v566
        %918 = vmatprep.subr.mxu0 0.0
        %919 = vmatpush1.msra.mxu0 %v567
        %920 = vmatprep.subr.mxu0 0.0
        %921 = vmatpush1.msra.mxu0 %v568
        %922 = vmatprep.subr.mxu0 0.0
        %923 = vmatpush1.msra.mxu0 %v569
        %924 = vmatprep.subr.mxu0 0.0
        %925 = vmatpush1.msra.mxu0 %v570
        %926 = vmatprep.subr.mxu0 0.0
        %927 = vmatpush1.msra.mxu0 %v571
        %928 = vmatprep.subr.mxu0 0.0
        %929 = vmatpush1.msra.mxu0 %v572
        %930 = vmatprep.subr.mxu0 0.0
        %931 = vmatpush1.msra.mxu0 %v573
        %932 = vmatprep.subr.mxu0 0.0
        %933 = vmatpush1.msra.mxu0 %v574
        %934 = vmatprep.subr.mxu0 0.0
        %935 = vmatpush1.msra.mxu0 %v575
        %936 = vmatprep.subr.mxu0 0.0
        %937 = vmatpush1.msra.mxu0 %v576
        %938 = vmatprep.subr.mxu0 0.0
        %939 = vmatpush1.msra.mxu0 %v577
        %940 = vmatprep.subr.mxu0 0.0
        %941 = vmatpush1.msra.mxu0 %v578
        %942 = vmatprep.subr.mxu0 0.0
        %943 = vmatpush1.msra.mxu0 %v579
        %944 = vmatprep.subr.mxu0 0.0
        %945 = vmatpush1.msra.mxu0 %v580
        %946 = vmatprep.subr.mxu0 0.0
        %947 = vmatpush1.msra.mxu0 %v581
        %948 = vmatprep.subr.mxu0 0.0
        %949 = vmatpush1.msra.mxu0 %v582
        %950 = vmatprep.subr.mxu0 0.0
        %951 = vmatpush1.msra.mxu0 %v583
        %952 = vmatprep.subr.mxu0 0.0
        %953 = vmatpush1.msra.mxu0 %v584
        %954 = vmatprep.subr.mxu0 0.0
        %955 = vmatpush1.msra.mxu0 %v585
        %956 = vmatprep.subr.mxu0 0.0
        %957 = vmatpush1.msra.mxu0 %v586
        %958 = vmatprep.mubr.f32.mxu0 %v821
        %959 = vmatmul.mubr.f32.gmra.mrb[0].mxu0 %v817
        %v960 = vpop.f32.mrb[0].mxu0
        %v961 = vadd.f32 %v811, %v960
        %v962 = vpop.f32.mrb[0].mxu0
        %963 = vdwg.mxu0
        %964 = vmatprep.subr.mxu0 0.0
        %965 = vmatpush1.msra.mxu0 %v587
        %966 = vmatprep.subr.mxu0 0.0
        %967 = vmatpush1.msra.mxu0 %v588
        %968 = vmatprep.subr.mxu0 0.0
        %969 = vmatpush1.msra.mxu0 %v589
        %970 = vmatprep.subr.mxu0 0.0
        %971 = vmatpush1.msra.mxu0 %v590
        %972 = vmatprep.subr.mxu0 0.0
        %973 = vmatpush1.msra.mxu0 %v591
        %974 = vmatprep.subr.mxu0 0.0
        %975 = vmatpush1.msra.mxu0 %v592
        %976 = vmatprep.subr.mxu0 0.0
        %977 = vmatpush1.msra.mxu0 %v593
        %978 = vmatprep.subr.mxu0 0.0
        %979 = vmatpush1.msra.mxu0 %v594
        %980 = vmatprep.subr.mxu0 0.0
        %981 = vmatpush1.msra.mxu0 %v595
        %982 = vmatprep.subr.mxu0 0.0
        %983 = vmatpush1.msra.mxu0 %v596
        %984 = vmatprep.subr.mxu0 0.0
        %985 = vmatpush1.msra.mxu0 %v597
        %986 = vmatprep.subr.mxu0 0.0
        %987 = vmatpush1.msra.mxu0 %v598
        %988 = vmatprep.subr.mxu0 0.0
        %989 = vmatpush1.msra.mxu0 %v599
        %990 = vmatprep.subr.mxu0 0.0
        %991 = vmatpush1.msra.mxu0 %v600
        %992 = vmatprep.subr.mxu0 0.0
        %993 = vmatpush1.msra.mxu0 %v601
        %994 = vmatprep.subr.mxu0 0.0
        %995 = vmatpush1.msra.mxu0 %v602
        %996 = vmatprep.subr.mxu0 0.0
        %997 = vmatpush1.msra.mxu0 %v603
        %998 = vmatprep.subr.mxu0 0.0
        %999 = vmatpush1.msra.mxu0 %v604
        %1000 = vmatprep.subr.mxu0 0.0
        %1001 = vmatpush1.msra.mxu0 %v605
        %1002 = vmatprep.subr.mxu0 0.0
        %1003 = vmatpush1.msra.mxu0 %v606
        %1004 = vmatprep.subr.mxu0 0.0
        %1005 = vmatpush1.msra.mxu0 %v607
        %1006 = vmatprep.subr.mxu0 0.0
        %1007 = vmatpush1.msra.mxu0 %v608
        %1008 = vmatprep.subr.mxu0 0.0
        %1009 = vmatpush1.msra.mxu0 %v609
        %1010 = vmatprep.subr.mxu0 0.0
        %1011 = vmatpush1.msra.mxu0 %v610
        %1012 = vmatprep.subr.mxu0 0.0
        %1013 = vmatpush1.msra.mxu0 %v611
        %1014 = vmatprep.subr.mxu0 0.0
        %1015 = vmatpush1.msra.mxu0 %v612
        %1016 = vmatprep.subr.mxu0 0.0
        %1017 = vmatpush1.msra.mxu0 %v613
        %1018 = vmatprep.subr.mxu0 0.0
        %1019 = vmatpush1.msra.mxu0 %v614
        %1020 = vmatprep.subr.mxu0 0.0
        %1021 = vmatpush1.msra.mxu0 %v615
        %1022 = vmatprep.subr.mxu0 0.0
        %1023 = vmatpush1.msra.mxu0 %v616
        %1024 = vmatprep.subr.mxu0 0.0
        %1025 = vmatpush1.msra.mxu0 %v617
        %1026 = vmatprep.subr.mxu0 0.0
        %1027 = vmatpush1.msra.mxu0 %v618
        %1028 = vmatprep.mubr.f32.mxu0 %v829
        %1029 = vmatmul.mubr.f32.gmra.mrb[0].mxu0 %v825
        %v1030 = vpop.f32.mrb[0].mxu0
        %v1031 = vadd.f32 %v961, %v1030
        %v1032 = vpop.f32.mrb[0].mxu0
        %1033 = vdwg.mxu0
        %1034 = vmatprep.subr.mxu0 0.0
        %1035 = vmatpush1.msra.mxu0 %v619
        %1036 = vmatprep.subr.mxu0 0.0
        %1037 = vmatpush1.msra.mxu0 %v620
        %1038 = vmatprep.subr.mxu0 0.0
        %1039 = vmatpush1.msra.mxu0 %v621
        %1040 = vmatprep.subr.mxu0 0.0
        %1041 = vmatpush1.msra.mxu0 %v622
        %1042 = vmatprep.subr.mxu0 0.0
        %1043 = vmatpush1.msra.mxu0 %v623
        %1044 = vmatprep.subr.mxu0 0.0
        %1045 = vmatpush1.msra.mxu0 %v624
        %1046 = vmatprep.subr.mxu0 0.0
        %1047 = vmatpush1.msra.mxu0 %v625
        %1048 = vmatprep.subr.mxu0 0.0
        %1049 = vmatpush1.msra.mxu0 %v626
        %1050 = vmatprep.subr.mxu0 0.0
        %1051 = vmatpush1.msra.mxu0 %v627
        %1052 = vmatprep.subr.mxu0 0.0
        %1053 = vmatpush1.msra.mxu0 %v628
        %1054 = vmatprep.subr.mxu0 0.0
        %1055 = vmatpush1.msra.mxu0 %v629
        %1056 = vmatprep.subr.mxu0 0.0
        %1057 = vmatpush1.msra.mxu0 %v630
        %1058 = vmatprep.subr.mxu0 0.0
        %1059 = vmatpush1.msra.mxu0 %v631
        %1060 = vmatprep.subr.mxu0 0.0
        %1061 = vmatpush1.msra.mxu0 %v632
        %1062 = vmatprep.subr.mxu0 0.0
        %1063 = vmatpush1.msra.mxu0 %v633
        %1064 = vmatprep.subr.mxu0 0.0
        %1065 = vmatpush1.msra.mxu0 %v634
        %1066 = vmatprep.subr.mxu0 0.0
        %1067 = vmatpush1.msra.mxu0 %v635
        %1068 = vmatprep.subr.mxu0 0.0
        %1069 = vmatpush1.msra.mxu0 %v636
        %1070 = vmatprep.subr.mxu0 0.0
        %1071 = vmatpush1.msra.mxu0 %v637
        %1072 = vmatprep.subr.mxu0 0.0
        %1073 = vmatpush1.msra.mxu0 %v638
        %1074 = vmatprep.subr.mxu0 0.0
        %1075 = vmatpush1.msra.mxu0 %v639
        %1076 = vmatprep.subr.mxu0 0.0
        %1077 = vmatpush1.msra.mxu0 %v640
        %1078 = vmatprep.subr.mxu0 0.0
        %1079 = vmatpush1.msra.mxu0 %v641
        %1080 = vmatprep.subr.mxu0 0.0
        %1081 = vmatpush1.msra.mxu0 %v642
        %1082 = vmatprep.subr.mxu0 0.0
        %1083 = vmatpush1.msra.mxu0 %v643
        %1084 = vmatprep.subr.mxu0 0.0
        %1085 = vmatpush1.msra.mxu0 %v644
        %1086 = vmatprep.subr.mxu0 0.0
        %1087 = vmatpush1.msra.mxu0 %v645
        %1088 = vmatprep.subr.mxu0 0.0
        %1089 = vmatpush1.msra.mxu0 %v646
        %1090 = vmatprep.subr.mxu0 0.0
        %1091 = vmatpush1.msra.mxu0 %v647
        %1092 = vmatprep.subr.mxu0 0.0
        %1093 = vmatpush1.msra.mxu0 %v648
        %1094 = vmatprep.subr.mxu0 0.0
        %1095 = vmatpush1.msra.mxu0 %v649
        %1096 = vmatprep.subr.mxu0 0.0
        %1097 = vmatpush1.msra.mxu0 %v650
        %1098 = vmatprep.mubr.f32.mxu0 %v837
        %1099 = vmatmul.mubr.f32.gmra.mrb[0].mxu0 %v833
        %v1100 = vpop.f32.mrb[0].mxu0
        %v1101 = vadd.f32 %v1031, %v1100
        %v1102 = vpop.f32.mrb[0].mxu0
        %1103 = vdwg.mxu0
        %1104 = vmatprep.subr.mxu0 0.0
        %1105 = vmatpush1.msra.mxu0 %v651
        %1106 = vmatprep.subr.mxu0 0.0
        %1107 = vmatpush1.msra.mxu0 %v652
        %1108 = vmatprep.subr.mxu0 0.0
        %1109 = vmatpush1.msra.mxu0 %v653
        %1110 = vmatprep.subr.mxu0 0.0
        %1111 = vmatpush1.msra.mxu0 %v654
        %1112 = vmatprep.subr.mxu0 0.0
        %1113 = vmatpush1.msra.mxu0 %v655
        %1114 = vmatprep.subr.mxu0 0.0
        %1115 = vmatpush1.msra.mxu0 %v656
        %1116 = vmatprep.subr.mxu0 0.0
        %1117 = vmatpush1.msra.mxu0 %v657
        %1118 = vmatprep.subr.mxu0 0.0
        %1119 = vmatpush1.msra.mxu0 %v658
        %1120 = vmatprep.subr.mxu0 0.0
        %1121 = vmatpush1.msra.mxu0 %v659
        %1122 = vmatprep.subr.mxu0 0.0
        %1123 = vmatpush1.msra.mxu0 %v660
        %1124 = vmatprep.subr.mxu0 0.0
        %1125 = vmatpush1.msra.mxu0 %v661
        %1126 = vmatprep.subr.mxu0 0.0
        %1127 = vmatpush1.msra.mxu0 %v662
        %1128 = vmatprep.subr.mxu0 0.0
        %1129 = vmatpush1.msra.mxu0 %v663
        %1130 = vmatprep.subr.mxu0 0.0
        %1131 = vmatpush1.msra.mxu0 %v664
        %1132 = vmatprep.subr.mxu0 0.0
        %1133 = vmatpush1.msra.mxu0 %v665
        %1134 = vmatprep.subr.mxu0 0.0
        %1135 = vmatpush1.msra.mxu0 %v666
        %1136 = vmatprep.subr.mxu0 0.0
        %1137 = vmatpush1.msra.mxu0 %v667
        %1138 = vmatprep.subr.mxu0 0.0
        %1139 = vmatpush1.msra.mxu0 %v668
        %1140 = vmatprep.subr.mxu0 0.0
        %1141 = vmatpush1.msra.mxu0 %v669
        %1142 = vmatprep.subr.mxu0 0.0
        %1143 = vmatpush1.msra.mxu0 %v670
        %1144 = vmatprep.subr.mxu0 0.0
        %1145 = vmatpush1.msra.mxu0 %v671
        %1146 = vmatprep.subr.mxu0 0.0
        %1147 = vmatpush1.msra.mxu0 %v672
        %1148 = vmatprep.subr.mxu0 0.0
        %1149 = vmatpush1.msra.mxu0 %v673
        %1150 = vmatprep.subr.mxu0 0.0
        %1151 = vmatpush1.msra.mxu0 %v674
        %1152 = vmatprep.subr.mxu0 0.0
        %1153 = vmatpush1.msra.mxu0 %v675
        %1154 = vmatprep.subr.mxu0 0.0
        %1155 = vmatpush1.msra.mxu0 %v676
        %1156 = vmatprep.subr.mxu0 0.0
        %1157 = vmatpush1.msra.mxu0 %v677
        %1158 = vmatprep.subr.mxu0 0.0
        %1159 = vmatpush1.msra.mxu0 %v678
        %1160 = vmatprep.subr.mxu0 0.0
        %1161 = vmatpush1.msra.mxu0 %v679
        %1162 = vmatprep.subr.mxu0 0.0
        %1163 = vmatpush1.msra.mxu0 %v680
        %1164 = vmatprep.subr.mxu0 0.0
        %1165 = vmatpush1.msra.mxu0 %v681
        %1166 = vmatprep.subr.mxu0 0.0
        %1167 = vmatpush1.msra.mxu0 %v682
        %1168 = vmatprep.mubr.f32.mxu0 %v845
        %1169 = vmatmul.mubr.f32.gmra.mrb[0].mxu0 %v841
        %v1170 = vpop.f32.mrb[0].mxu0
        %v1171 = vadd.f32 %v1101, %v1170
        %v1172 = vpop.f32.mrb[0].mxu0
        %1173 = vdwg.mxu0
        %1174 = vmatprep.subr.mxu0 0.0
        %1175 = vmatpush1.msra.mxu0 %v683
        %1176 = vmatprep.subr.mxu0 0.0
        %1177 = vmatpush1.msra.mxu0 %v684
        %1178 = vmatprep.subr.mxu0 0.0
        %1179 = vmatpush1.msra.mxu0 %v685
        %1180 = vmatprep.subr.mxu0 0.0
        %1181 = vmatpush1.msra.mxu0 %v686
        %1182 = vmatprep.subr.mxu0 0.0
        %1183 = vmatpush1.msra.mxu0 %v687
        %1184 = vmatprep.subr.mxu0 0.0
        %1185 = vmatpush1.msra.mxu0 %v688
        %1186 = vmatprep.subr.mxu0 0.0
        %1187 = vmatpush1.msra.mxu0 %v689
        %1188 = vmatprep.subr.mxu0 0.0
        %1189 = vmatpush1.msra.mxu0 %v690
        %1190 = vmatprep.subr.mxu0 0.0
        %1191 = vmatpush1.msra.mxu0 %v691
        %1192 = vmatprep.subr.mxu0 0.0
        %1193 = vmatpush1.msra.mxu0 %v692
        %1194 = vmatprep.subr.mxu0 0.0
        %1195 = vmatpush1.msra.mxu0 %v693
        %1196 = vmatprep.subr.mxu0 0.0
        %1197 = vmatpush1.msra.mxu0 %v694
        %1198 = vmatprep.subr.mxu0 0.0
        %1199 = vmatpush1.msra.mxu0 %v695
        %1200 = vmatprep.subr.mxu0 0.0
        %1201 = vmatpush1.msra.mxu0 %v696
        %1202 = vmatprep.subr.mxu0 0.0
        %1203 = vmatpush1.msra.mxu0 %v697
        %1204 = vmatprep.subr.mxu0 0.0
        %1205 = vmatpush1.msra.mxu0 %v698
        %1206 = vmatprep.subr.mxu0 0.0
        %1207 = vmatpush1.msra.mxu0 %v699
        %1208 = vmatprep.subr.mxu0 0.0
        %1209 = vmatpush1.msra.mxu0 %v700
        %1210 = vmatprep.subr.mxu0 0.0
        %1211 = vmatpush1.msra.mxu0 %v701
        %1212 = vmatprep.subr.mxu0 0.0
        %1213 = vmatpush1.msra.mxu0 %v702
        %1214 = vmatprep.subr.mxu0 0.0
        %1215 = vmatpush1.msra.mxu0 %v703
        %1216 = vmatprep.subr.mxu0 0.0
        %1217 = vmatpush1.msra.mxu0 %v704
        %1218 = vmatprep.subr.mxu0 0.0
        %1219 = vmatpush1.msra.mxu0 %v705
        %1220 = vmatprep.subr.mxu0 0.0
        %1221 = vmatpush1.msra.mxu0 %v706
        %1222 = vmatprep.subr.mxu0 0.0
        %1223 = vmatpush1.msra.mxu0 %v707
        %1224 = vmatprep.subr.mxu0 0.0
        %1225 = vmatpush1.msra.mxu0 %v708
        %1226 = vmatprep.subr.mxu0 0.0
        %1227 = vmatpush1.msra.mxu0 %v709
        %1228 = vmatprep.subr.mxu0 0.0
        %1229 = vmatpush1.msra.mxu0 %v710
        %1230 = vmatprep.subr.mxu0 0.0
        %1231 = vmatpush1.msra.mxu0 %v711
        %1232 = vmatprep.subr.mxu0 0.0
        %1233 = vmatpush1.msra.mxu0 %v712
        %1234 = vmatprep.subr.mxu0 0.0
        %1235 = vmatpush1.msra.mxu0 %v713
        %1236 = vmatprep.subr.mxu0 0.0
        %1237 = vmatpush1.msra.mxu0 %v714
        %1238 = vmatprep.mubr.f32.mxu0 %v853
        %1239 = vmatmul.mubr.f32.gmra.mrb[0].mxu0 %v849
        %v1240 = vpop.f32.mrb[0].mxu0
        %v1241 = vadd.f32 %v1171, %v1240
        %v1242 = vpop.f32.mrb[0].mxu0
        %1243 = vdwg.mxu0
        %1244 = vmatprep.subr.mxu0 0.0
        %1245 = vmatpush1.msra.mxu0 %v715
        %1246 = vmatprep.subr.mxu0 0.0
        %1247 = vmatpush1.msra.mxu0 %v716
        %1248 = vmatprep.subr.mxu0 0.0
        %1249 = vmatpush1.msra.mxu0 %v717
        %1250 = vmatprep.subr.mxu0 0.0
        %1251 = vmatpush1.msra.mxu0 %v718
        %1252 = vmatprep.subr.mxu0 0.0
        %1253 = vmatpush1.msra.mxu0 %v719
        %1254 = vmatprep.subr.mxu0 0.0
        %1255 = vmatpush1.msra.mxu0 %v720
        %1256 = vmatprep.subr.mxu0 0.0
        %1257 = vmatpush1.msra.mxu0 %v721
        %1258 = vmatprep.subr.mxu0 0.0
        %1259 = vmatpush1.msra.mxu0 %v722
        %1260 = vmatprep.subr.mxu0 0.0
        %1261 = vmatpush1.msra.mxu0 %v723
        %1262 = vmatprep.subr.mxu0 0.0
        %1263 = vmatpush1.msra.mxu0 %v724
        %1264 = vmatprep.subr.mxu0 0.0
        %1265 = vmatpush1.msra.mxu0 %v725
        %1266 = vmatprep.subr.mxu0 0.0
        %1267 = vmatpush1.msra.mxu0 %v726
        %1268 = vmatprep.subr.mxu0 0.0
        %1269 = vmatpush1.msra.mxu0 %v727
        %1270 = vmatprep.subr.mxu0 0.0
        %1271 = vmatpush1.msra.mxu0 %v728
        %1272 = vmatprep.subr.mxu0 0.0
        %1273 = vmatpush1.msra.mxu0 %v729
        %1274 = vmatprep.subr.mxu0 0.0
        %1275 = vmatpush1.msra.mxu0 %v730
        %1276 = vmatprep.subr.mxu0 0.0
        %1277 = vmatpush1.msra.mxu0 %v731
        %1278 = vmatprep.subr.mxu0 0.0
        %1279 = vmatpush1.msra.mxu0 %v732
        %1280 = vmatprep.subr.mxu0 0.0
        %1281 = vmatpush1.msra.mxu0 %v733
        %1282 = vmatprep.subr.mxu0 0.0
        %1283 = vmatpush1.msra.mxu0 %v734
        %1284 = vmatprep.subr.mxu0 0.0
        %1285 = vmatpush1.msra.mxu0 %v735
        %1286 = vmatprep.subr.mxu0 0.0
        %1287 = vmatpush1.msra.mxu0 %v736
        %1288 = vmatprep.subr.mxu0 0.0
        %1289 = vmatpush1.msra.mxu0 %v737
        %1290 = vmatprep.subr.mxu0 0.0
        %1291 = vmatpush1.msra.mxu0 %v738
        %1292 = vmatprep.subr.mxu0 0.0
        %1293 = vmatpush1.msra.mxu0 %v739
        %1294 = vmatprep.subr.mxu0 0.0
        %1295 = vmatpush1.msra.mxu0 %v740
        %1296 = vmatprep.subr.mxu0 0.0
        %1297 = vmatpush1.msra.mxu0 %v741
        %1298 = vmatprep.subr.mxu0 0.0
        %1299 = vmatpush1.msra.mxu0 %v742
        %1300 = vmatprep.subr.mxu0 0.0
        %1301 = vmatpush1.msra.mxu0 %v743
        %1302 = vmatprep.subr.mxu0 0.0
        %1303 = vmatpush1.msra.mxu0 %v744
        %1304 = vmatprep.subr.mxu0 0.0
        %1305 = vmatpush1.msra.mxu0 %v745
        %1306 = vmatprep.subr.mxu0 0.0
        %1307 = vmatpush1.msra.mxu0 %v746
        %1308 = vmatprep.mubr.f32.mxu0 %v861
        %1309 = vmatmul.mubr.f32.gmra.mrb[0].mxu0 %v857
        %v1310 = vpop.f32.mrb[0].mxu0
        %v1311 = vadd.f32 %v1241, %v1310
        %v1312 = vpop.f32.mrb[0].mxu0
        %1313 = vdwg.mxu0
        %1314 = vmatprep.subr.mxu0 0.0
        %1315 = vmatpush1.msra.mxu0 %v747
        %1316 = vmatprep.subr.mxu0 0.0
        %1317 = vmatpush1.msra.mxu0 %v748
        %1318 = vmatprep.subr.mxu0 0.0
        %1319 = vmatpush1.msra.mxu0 %v749
        %1320 = vmatprep.subr.mxu0 0.0
        %1321 = vmatpush1.msra.mxu0 %v750
        %1322 = vmatprep.subr.mxu0 0.0
        %1323 = vmatpush1.msra.mxu0 %v751
        %1324 = vmatprep.subr.mxu0 0.0
        %1325 = vmatpush1.msra.mxu0 %v752
        %1326 = vmatprep.subr.mxu0 0.0
        %1327 = vmatpush1.msra.mxu0 %v753
        %1328 = vmatprep.subr.mxu0 0.0
        %1329 = vmatpush1.msra.mxu0 %v754
        %1330 = vmatprep.subr.mxu0 0.0
        %1331 = vmatpush1.msra.mxu0 %v755
        %1332 = vmatprep.subr.mxu0 0.0
        %1333 = vmatpush1.msra.mxu0 %v756
        %1334 = vmatprep.subr.mxu0 0.0
        %1335 = vmatpush1.msra.mxu0 %v757
        %1336 = vmatprep.subr.mxu0 0.0
        %1337 = vmatpush1.msra.mxu0 %v758
        %1338 = vmatprep.subr.mxu0 0.0
        %1339 = vmatpush1.msra.mxu0 %v759
        %1340 = vmatprep.subr.mxu0 0.0
        %1341 = vmatpush1.msra.mxu0 %v760
        %1342 = vmatprep.subr.mxu0 0.0
        %1343 = vmatpush1.msra.mxu0 %v761
        %1344 = vmatprep.subr.mxu0 0.0
        %1345 = vmatpush1.msra.mxu0 %v762
        %1346 = vmatprep.subr.mxu0 0.0
        %1347 = vmatpush1.msra.mxu0 %v763
        %1348 = vmatprep.subr.mxu0 0.0
        %1349 = vmatpush1.msra.mxu0 %v764
        %1350 = vmatprep.subr.mxu0 0.0
        %1351 = vmatpush1.msra.mxu0 %v765
        %1352 = vmatprep.subr.mxu0 0.0
        %1353 = vmatpush1.msra.mxu0 %v766
        %1354 = vmatprep.subr.mxu0 0.0
        %1355 = vmatpush1.msra.mxu0 %v767
        %1356 = vmatprep.subr.mxu0 0.0
        %1357 = vmatpush1.msra.mxu0 %v768
        %1358 = vmatprep.subr.mxu0 0.0
        %1359 = vmatpush1.msra.mxu0 %v769
        %1360 = vmatprep.subr.mxu0 0.0
        %1361 = vmatpush1.msra.mxu0 %v770
        %1362 = vmatprep.subr.mxu0 0.0
        %1363 = vmatpush1.msra.mxu0 %v771
        %1364 = vmatprep.subr.mxu0 0.0
        %1365 = vmatpush1.msra.mxu0 %v772
        %1366 = vmatprep.subr.mxu0 0.0
        %1367 = vmatpush1.msra.mxu0 %v773
        %1368 = vmatprep.subr.mxu0 0.0
        %1369 = vmatpush1.msra.mxu0 %v774
        %1370 = vmatprep.subr.mxu0 0.0
        %1371 = vmatpush1.msra.mxu0 %v775
        %1372 = vmatprep.subr.mxu0 0.0
        %1373 = vmatpush1.msra.mxu0 %v776
        %1374 = vmatprep.subr.mxu0 0.0
        %1375 = vmatpush1.msra.mxu0 %v777
        %1376 = vmatprep.subr.mxu0 0.0
        %1377 = vmatpush1.msra.mxu0 %v778
        %1378 = vmatprep.mubr.f32.mxu0 %v869
        %1379 = vmatmul.mubr.f32.gmra.mrb[0].mxu0 %v865
        %v1380 = vpop.f32.mrb[0].mxu0
        %v1381 = vadd.f32 %v1311, %v1380
        %v1382 = vpop.f32.mrb[0].mxu0
        %1383 = vdwg.mxu0
        %1384 = vmatprep.subr.mxu0 0.0
        %1385 = vmatpush1.msra.mxu0 %v779
        %1386 = vmatprep.subr.mxu0 0.0
        %1387 = vmatpush1.msra.mxu0 %v780
        %1388 = vmatprep.subr.mxu0 0.0
        %1389 = vmatpush1.msra.mxu0 %v781
        %1390 = vmatprep.subr.mxu0 0.0
        %1391 = vmatpush1.msra.mxu0 %v782
        %1392 = vmatprep.subr.mxu0 0.0
        %1393 = vmatpush1.msra.mxu0 %v783
        %1394 = vmatprep.subr.mxu0 0.0
        %1395 = vmatpush1.msra.mxu0 %v784
        %1396 = vmatprep.subr.mxu0 0.0
        %1397 = vmatpush1.msra.mxu0 %v785
        %1398 = vmatprep.subr.mxu0 0.0
        %1399 = vmatpush1.msra.mxu0 %v786
        %1400 = vmatprep.subr.mxu0 0.0
        %1401 = vmatpush1.msra.mxu0 %v787
        %1402 = vmatprep.subr.mxu0 0.0
        %1403 = vmatpush1.msra.mxu0 %v788
        %1404 = vmatprep.subr.mxu0 0.0
        %1405 = vmatpush1.msra.mxu0 %v789
        %1406 = vmatprep.subr.mxu0 0.0
        %1407 = vmatpush1.msra.mxu0 %v790
        %1408 = vmatprep.subr.mxu0 0.0
        %1409 = vmatpush1.msra.mxu0 %v791
        %1410 = vmatprep.subr.mxu0 0.0
        %1411 = vmatpush1.msra.mxu0 %v792
        %1412 = vmatprep.subr.mxu0 0.0
        %1413 = vmatpush1.msra.mxu0 %v793
        %1414 = vmatprep.subr.mxu0 0.0
        %1415 = vmatpush1.msra.mxu0 %v794
        %1416 = vmatprep.subr.mxu0 0.0
        %1417 = vmatpush1.msra.mxu0 %v795
        %1418 = vmatprep.subr.mxu0 0.0
        %1419 = vmatpush1.msra.mxu0 %v796
        %1420 = vmatprep.subr.mxu0 0.0
        %1421 = vmatpush1.msra.mxu0 %v797
        %1422 = vmatprep.subr.mxu0 0.0
        %1423 = vmatpush1.msra.mxu0 %v798
        %1424 = vmatprep.subr.mxu0 0.0
        %1425 = vmatpush1.msra.mxu0 %v799
        %1426 = vmatprep.subr.mxu0 0.0
        %1427 = vmatpush1.msra.mxu0 %v800
        %1428 = vmatprep.subr.mxu0 0.0
        %1429 = vmatpush1.msra.mxu0 %v801
        %1430 = vmatprep.subr.mxu0 0.0
        %1431 = vmatpush1.msra.mxu0 %v802
        %1432 = vmatprep.subr.mxu0 0.0
        %1433 = vmatpush1.msra.mxu0 %v803
        %1434 = vmatprep.subr.mxu0 0.0
        %1435 = vmatpush1.msra.mxu0 %v804
        %1436 = vmatprep.subr.mxu0 0.0
        %1437 = vmatpush1.msra.mxu0 %v805
        %1438 = vmatprep.subr.mxu0 0.0
        %1439 = vmatpush1.msra.mxu0 %v806
        %1440 = vmatprep.subr.mxu0 0.0
        %1441 = vmatpush1.msra.mxu0 %v807
        %1442 = vmatprep.subr.mxu0 0.0
        %1443 = vmatpush1.msra.mxu0 %v808
        %1444 = vmatprep.subr.mxu0 0.0
        %1445 = vmatpush1.msra.mxu0 %v809
        %1446 = vmatprep.subr.mxu0 0.0
        %1447 = vmatpush1.msra.mxu0 %v810
        %1448 = vmatprep.mubr.f32.mxu0 %v877
        %1449 = vmatmul.mubr.f32.gmra.mrb[0].mxu0 %v873
        %v1450 = vpop.f32.mrb[0].mxu0
        %v1451 = vadd.f32 %v1381, %v1450
        %v1452 = vpop.f32.mrb[0].mxu0
        %1453 = vdwg.mxu0
        %1454 = vst [vmem:[%s231] sm:$0x1] %v1451
        %s1455 = sand.u32 %s138, 1
        %s1456 = scalar_lea.sflag [#allocation4], %s1455
        %s1457 = sand.u32 %s138, 1
        %s1458 = scalar_lea.vmem [#allocation5], %s1457
        // Predicated region
        $region45: #{model_forward.1} parent=39 // pred_check
          %p1459 = pneg %p148
        $region46: #{model_forward.1} parent=39 // pred_check_branch
          %1461 = sbr.rel (%p1459) target = $region48
        $region47: #{model_forward.1} parent=39 // pred_region
          %s1463 = ssub.s32 16, 16
          %1464 = vsyncadd %s1456, %s1463
          %s1465 = smul.addr %s20, 16
          %s1466 = scalar_lea.hbm %s5, %s1465
          %s1468 = sshll.u32 %s1458, 4
          %s1469 = int_to_ptr.vmem [resolvable:$true] %s1468
          %1471 = dma.vmem_to_hbm [thread:$0]  %s1469, 16, %s1466, %s1456
        $region48: #{model_forward.1} parent=39 // pred_fallthru
          _
      $region40: #{model_forward.1} parent=5 // pred_fallthru
        _
      %p1472 = scmp.le.s32.totalorder 2, %s15
      // Predicated region
      $region49: #{model_forward.1} parent=5 // pred_check
        %p1473 = pneg %p1472
      $region50: #{model_forward.1} parent=5 // pred_check_branch
        %1475 = sbr.rel (%p1473) target = $region52
      $region51: #{model_forward.1} parent=5 // pred_region
        %s1476 = ssub.s32 %s15, 2
        // Predicated region
        $region53: #{model_forward.1} parent=51 // pred_check
          %p1477 = pneg %p154
        $region54: #{model_forward.1} parent=51 // pred_check_branch
          %1479 = sbr.rel (%p1477) target = $region56
        $region55: #{model_forward.1} parent=51 // pred_region
          %s1480 = sand.u32 %s139, 1
          %s1481 = scalar_lea.sflag [#allocation4], %s1480
          %s1482 = sand.u32 %s139, 1
          %s1483 = scalar_lea.vmem [#allocation5], %s1482
          %1484 = dma.done %s1481, 16
        $region56: #{model_forward.1} parent=51 // pred_fallthru
          _
      $region52: #{model_forward.1} parent=5 // pred_fallthru
        _
    $region6: #{model_forward.1} parent=1 // loop_footer
      %s19 = sadd.s32 1, %s15
    $region7: #{model_forward.1} parent=1 // loop_footer_branch
      %14 = sbr.rel target = $region3
    $region8: #{model_forward.1} parent=1 // loop_exit
      _
    %1485 = vsyncpa [#allocation3], 1
    %s1486 = scalar_lea.sflag [#allocation3], 1
    %1487 = vsyncpa %s1486, 1
    %1488 = vsyncpa [#allocation4], 1
    %s1489 = scalar_lea.sflag [#allocation4], 1
    %1490 = vsyncpa %s1489, 1

</llo_original>
